<compile_context>
chip_gen: v7x
topology: tpu7x:2x2x1
jax: 0.10.0
libtpu: 0.0.40
codegen_flags: <defaults>
</compile_context>

<pallas_src>
import functools

import jax
import jax.numpy as jnp
from jax.experimental import pallas as pl
from jax.experimental.pallas import tpu as pltpu


def _round_up(x, m):
    return ((x + m - 1) // m) * m


def ekd_kernel(f_t_ref, f_s_ref, wlb_ref, blb_ref,
               a_ref, at_ref, b1_ref, v_ref,
               out_ref, *, valid_b, tile_b):
    i = pl.program_id(0)

    # ---- linear_block: Linear(256, 3*S*S) + Tanh (bf16 MXU, f32 accumulate) ----
    ft = f_t_ref[...].astype(jnp.bfloat16)                                   # (TB, 256)
    proj = jnp.tanh(
        jnp.dot(ft, wlb_ref[...], preferred_element_type=jnp.float32)
        + blb_ref[...]                                                       # (1, D) broadcast
    )                                                                        # (TB, D) f32

    # ---- sample = (f_s + f_t_project) / 2 ----
    sample = (f_s_ref[...].astype(jnp.float32) + proj) * 0.5                 # (TB, D) f32

    # ---- fused teacher+student analytic energy gradients ----
    # h = sample @ [a_t | a_s] + [b1_t | b1_s]
    # s = (1 - tanh(h)^2) * [-v_t | v_s]        (zero-padded lanes -> zero)
    # diff = grad_pos - grad_neg = s @ [a_t^T ; a_s^T]
    h = jnp.dot(sample.astype(jnp.bfloat16), a_ref[...],
                preferred_element_type=jnp.float32) + b1_ref[...]            # (TB, Hp)
    t = jnp.tanh(h)
    s = (1.0 - t * t) * v_ref[...]                                           # (TB, Hp) f32
    diff = jnp.dot(s.astype(jnp.bfloat16), at_ref[...],
                   preferred_element_type=jnp.float32)                       # (TB, D) f32

    # ---- mask padded batch rows, emit per-tile partial sum of squares ----
    row = jax.lax.broadcasted_iota(jnp.int32, (tile_b, 1), 0) + i * tile_b
    diff = jnp.where(row < valid_b, diff, 0.0)
    out_ref[0, 0] = jnp.sum(diff * diff)


def energy_kd_forward(f_s, f_t, params, *, block_b=128):
    B = f_s.shape[0]
    D = params["wlb_bf16"].shape[1]
    hp = params["a_fused"].shape[1]

    # NCHW -> (B, 3*S*S); same row-major index order as torch's .view(B,3,S,S)
    f_s_flat = f_s.reshape(B, D)

    tb = min(block_b, _round_up(B, 8))        # sublane-aligned batch tile
    b_pad = _round_up(B, tb)
    if b_pad != B:
        f_s_flat = jnp.pad(f_s_flat, ((0, b_pad - B), (0, 0)))
        f_t = jnp.pad(f_t, ((0, b_pad - B), (0, 0)))
    num_tiles = b_pad // tb

    kernel = functools.partial(ekd_kernel, valid_b=B, tile_b=tb)

    isz_s = jnp.dtype(f_s.dtype).itemsize
    isz_t = jnp.dtype(f_t.dtype).itemsize
    cost = pl.CostEstimate(
        flops=2 * b_pad * (256 * D + 2 * D * hp),
        transcendentals=b_pad * (D + hp),
        bytes_accessed=(b_pad * D * isz_s + b_pad * 256 * isz_t
                        + 256 * D * 2 + 2 * D * hp * 2 + 4 * num_tiles),
    )

    grid_spec = pltpu.PrefetchScalarGridSpec(
        num_scalar_prefetch=0,
        grid=(num_tiles,),
        in_specs=[
            pl.BlockSpec((tb, 256), lambda i: (i, 0)),   # f_t tile (pipelined)
            pl.BlockSpec((tb, D),   lambda i: (i, 0)),   # f_s tile (pipelined)
            pl.BlockSpec((256, D),  lambda i: (0, 0)),   # wlb   (VMEM-resident)
            pl.BlockSpec((1, D),    lambda i: (0, 0)),   # blb
            pl.BlockSpec((D, hp),   lambda i: (0, 0)),   # A_fused
            pl.BlockSpec((hp, D),   lambda i: (0, 0)),   # A^T_fused
            pl.BlockSpec((1, hp),   lambda i: (0, 0)),   # b1_fused
            pl.BlockSpec((1, hp),   lambda i: (0, 0)),   # v_fused
        ],
        out_specs=pl.BlockSpec((1, 1), lambda i: (i, 0),
                               memory_space=pltpu.MemorySpace.SMEM),
    )

    partials = pl.pallas_call(
        kernel,
        grid_spec=grid_spec,
        out_shape=jax.ShapeDtypeStruct((num_tiles, 1), jnp.float32),
        compiler_params=pltpu.CompilerParams(
            dimension_semantics=("parallel",)),
        cost_estimate=cost,
    )(f_t, f_s_flat,
      params["wlb_bf16"], params["blb"],
      params["a_fused"], params["at_fused"],
      params["b1_fused"], params["v_fused"])

    # mean over ALL of (B,3,S,S), /2, *120 — normalized with the true B*D count.
    return jnp.sum(partials) * (0.5 / (B * D)) * 120.0


def make_params(key, image_size=16, hidden=32, num_out=8, hidden_pad=128):
    D = 3 * image_size * image_size
    ks = jax.random.split(key, 8)
    scale = 0.05

    # linear_block: torch Linear(256, D) -> store transposed weight (256, D)
    wlb = scale * jax.random.normal(ks[0], (256, D), jnp.float32)
    blb = scale * jax.random.normal(ks[1], (1, D), jnp.float32)

    def energy_net(k1, k2, k3):
        a = scale * jax.random.normal(k1, (D, hidden), jnp.float32)          # x @ a
        b1 = scale * jax.random.normal(k2, (1, hidden), jnp.float32)
        w2 = scale * jax.random.normal(k3, (num_out, hidden), jnp.float32)
        v = jnp.sum(w2, axis=0).reshape(1, hidden)                           # sum_k W2[k,:]
        return a, b1, v, w2

    a_t, b1_t, v_t, w2_t = energy_net(ks[2], ks[3], ks[4])                   # teacher (te_model)
    a_s, b1_s, v_s, w2_s = energy_net(ks[5], ks[6], ks[7])                   # student (model)

    # ---- fuse teacher+student nets, zero-pad hidden to `hidden_pad` lanes ----
    h2 = 2 * hidden
    assert hidden_pad >= h2
    a_fused = jnp.zeros((D, hidden_pad), jnp.float32)
    a_fused = a_fused.at[:, :hidden].set(a_t).at[:, hidden:h2].set(a_s)
    at_fused = jnp.zeros((hidden_pad, D), jnp.float32)
    at_fused = at_fused.at[:hidden, :].set(a_t.T).at[hidden:h2, :].set(a_s.T)
    b1_fused = jnp.zeros((1, hidden_pad), jnp.float32)
    b1_fused = b1_fused.at[:, :hidden].set(b1_t).at[:, hidden:h2].set(b1_s)
    # INVARIANT: v_fused is zero in the padded tail — that (and zero A columns)
    # is what makes the padded lanes contribute exactly nothing.
    v_fused = jnp.zeros((1, hidden_pad), jnp.float32)
    v_fused = v_fused.at[:, :hidden].set(-v_t).at[:, hidden:h2].set(v_s)

    return dict(
        # bf16 MXU operands consumed by the kernel (f32 bias/scale vectors)
        wlb_bf16=wlb.astype(jnp.bfloat16), blb=blb,
        a_fused=a_fused.astype(jnp.bfloat16),
        at_fused=at_fused.astype(jnp.bfloat16),
        b1_fused=b1_fused, v_fused=v_fused,
        # f32 originals for the autodiff reference
        wlb=wlb,
        a_t=a_t, b1_t=b1_t, w2_t=w2_t,
        a_s=a_s, b1_s=b1_s, w2_s=w2_s,
    )


def reference_forward(f_s, f_t, p):
    # Pure-JAX f32 reference using autodiff, mirroring naive_score_matching.
    B = f_s.shape[0]
    proj = jnp.tanh(f_t @ p["wlb"] + p["blb"][0])
    sample = (f_s.reshape(B, -1) + proj) / 2.0

    def grad_of_neg_energy(a, b1, w2):
        def s_fn(x):
            e = jnp.tanh(x @ a + b1) @ w2.T
            return jnp.sum(-e)
        return jax.grad(s_fn)(sample)

    gp = grad_of_neg_energy(p["a_t"], p["b1_t"][0], p["w2_t"])
    gn = grad_of_neg_energy(p["a_s"], p["b1_s"][0], p["w2_s"])
    loss = jnp.mean((gp - gn) ** 2 / 2.0)
    return loss * 120.0


if __name__ == "__main__":
    B, S = 2, 16                      # batch, image_size (small demo shapes)
    key = jax.random.PRNGKey(0)
    k_fs, k_ft, k_p = jax.random.split(key, 3)

    f_s = jax.random.normal(k_fs, (B, 3, S, S), jnp.float32)   # student feature (NCHW)
    f_t = jax.random.normal(k_ft, (B, 256), jnp.float32)       # teacher feature vector
    params = make_params(k_p, image_size=S)

    loss = jax.block_until_ready(energy_kd_forward(f_s, f_t, params))
    ref = jax.block_until_ready(reference_forward(f_s, f_t, params))
    assert jnp.allclose(loss, ref, rtol=2e-2, atol=1e-3), (loss, ref)

    # TODO(synk): 'mcmc' mode and the Langevin-sampling / grad-clipping training
    # machinery (and getEnergy) are training-side and have no forward-pass
    # Pallas equivalent; not implemented.
    print("KERNEL_OK")
</pallas_src>

<mosaic_0001>
module attributes {stable_mosaic.version = 11 : i64} {
  func.func @ekd_kernel(%arg0: i32, %arg1: memref<8x256xf32, #tpu.memory_space<vmem>>, %arg2: memref<8x768xf32, #tpu.memory_space<vmem>>, %arg3: memref<256x768xbf16, #tpu.memory_space<vmem>>, %arg4: memref<1x768xf32, #tpu.memory_space<vmem>>, %arg5: memref<768x128xbf16, #tpu.memory_space<vmem>>, %arg6: memref<128x768xbf16, #tpu.memory_space<vmem>>, %arg7: memref<1x128xf32, #tpu.memory_space<vmem>>, %arg8: memref<1x128xf32, #tpu.memory_space<vmem>>, %arg9: memref<1x1xf32, #tpu.memory_space<smem>>) attributes {dimension_semantics = [#tpu.dimension_semantics<parallel>], iteration_bounds = array<i64: 1>, scalar_prefetch = 0 : i64, scratch_operands = 0 : i64, tpu.core_type = #tpu.core_type<tc>, window_params = [{transform_indices = @transform_0, window_bounds = array<i64: 8, 256>}, {transform_indices = @transform_1, window_bounds = array<i64: 8, 768>}, {pipeline_mode = #tpu.pipeline_mode<synchronous>, transform_indices = @transform_2, window_bounds = array<i64: 256, 768>}, {pipeline_mode = #tpu.pipeline_mode<synchronous>, transform_indices = @transform_3, window_bounds = array<i64: 1, 768>}, {pipeline_mode = #tpu.pipeline_mode<synchronous>, transform_indices = @transform_4, window_bounds = array<i64: 768, 128>}, {pipeline_mode = #tpu.pipeline_mode<synchronous>, transform_indices = @transform_5, window_bounds = array<i64: 128, 768>}, {pipeline_mode = #tpu.pipeline_mode<synchronous>, transform_indices = @transform_6, window_bounds = array<i64: 1, 128>}, {pipeline_mode = #tpu.pipeline_mode<synchronous>, transform_indices = @transform_7, window_bounds = array<i64: 1, 128>}, {transform_indices = @transform_8, window_bounds = array<i64: 1, 1>}]} {
    %c0 = arith.constant 0 : index
    %c0_0 = arith.constant 0 : index
    %0 = vector.load %arg1[%c0, %c0_0] : memref<8x256xf32, #tpu.memory_space<vmem>>, vector<8x256xf32>
    %1 = arith.truncf %0 : vector<8x256xf32> to vector<8x256xbf16>
    %c0_1 = arith.constant 0 : index
    %c0_2 = arith.constant 0 : index
    %2 = vector.load %arg3[%c0_1, %c0_2] : memref<256x768xbf16, #tpu.memory_space<vmem>>, vector<256x768xbf16>
    %cst = arith.constant dense<0.000000e+00> : vector<8x768xf32>
    %3 = tpu.matmul %1, %2, %cst {dimension_numbers = #tpu.dot_dimension_numbers<[1], [0], [0], [1], [0, 0, 1, 1], [], []>} : vector<8x256xbf16>, vector<256x768xbf16>, vector<8x768xf32> -> vector<8x768xf32>
    %c0_3 = arith.constant 0 : index
    %c0_4 = arith.constant 0 : index
    %4 = vector.load %arg4[%c0_3, %c0_4] : memref<1x768xf32, #tpu.memory_space<vmem>>, vector<1x768xf32>
    %5 = vector.broadcast %4 : vector<1x768xf32> to vector<8x768xf32>
    %6 = arith.addf %3, %5 : vector<8x768xf32>
    %7 = math.tanh %6 : vector<8x768xf32>
    %c0_5 = arith.constant 0 : index
    %c0_6 = arith.constant 0 : index
    %8 = vector.load %arg2[%c0_5, %c0_6] : memref<8x768xf32, #tpu.memory_space<vmem>>, vector<8x768xf32>
    %9 = arith.addf %8, %7 : vector<8x768xf32>
    %cst_7 = arith.constant 5.000000e-01 : f32
    %10 = vector.broadcast %cst_7 : f32 to vector<8x768xf32>
    %11 = arith.mulf %9, %10 : vector<8x768xf32>
    %12 = arith.truncf %11 : vector<8x768xf32> to vector<8x768xbf16>
    %c0_8 = arith.constant 0 : index
    %c0_9 = arith.constant 0 : index
    %13 = vector.load %arg5[%c0_8, %c0_9] : memref<768x128xbf16, #tpu.memory_space<vmem>>, vector<768x128xbf16>
    %cst_10 = arith.constant dense<0.000000e+00> : vector<8x128xf32>
    %14 = tpu.matmul %12, %13, %cst_10 {dimension_numbers = #tpu.dot_dimension_numbers<[1], [0], [0], [1], [0, 0, 1, 1], [], []>} : vector<8x768xbf16>, vector<768x128xbf16>, vector<8x128xf32> -> vector<8x128xf32>
    %c0_11 = arith.constant 0 : index
    %c0_12 = arith.constant 0 : index
    %15 = vector.load %arg7[%c0_11, %c0_12] : memref<1x128xf32, #tpu.memory_space<vmem>>, vector<1x128xf32>
    %16 = vector.broadcast %15 : vector<1x128xf32> to vector<8x128xf32>
    %17 = arith.addf %14, %16 : vector<8x128xf32>
    %18 = math.tanh %17 : vector<8x128xf32>
    %19 = arith.mulf %18, %18 : vector<8x128xf32>
    %cst_13 = arith.constant 1.000000e+00 : f32
    %20 = vector.broadcast %cst_13 : f32 to vector<8x128xf32>
    %21 = arith.subf %20, %19 : vector<8x128xf32>
    %c0_14 = arith.constant 0 : index
    %c0_15 = arith.constant 0 : index
    %22 = vector.load %arg8[%c0_14, %c0_15] : memref<1x128xf32, #tpu.memory_space<vmem>>, vector<1x128xf32>
    %23 = vector.broadcast %22 : vector<1x128xf32> to vector<8x128xf32>
    %24 = arith.mulf %21, %23 : vector<8x128xf32>
    %25 = arith.truncf %24 : vector<8x128xf32> to vector<8x128xbf16>
    %c0_16 = arith.constant 0 : index
    %c0_17 = arith.constant 0 : index
    %26 = vector.load %arg6[%c0_16, %c0_17] : memref<128x768xbf16, #tpu.memory_space<vmem>>, vector<128x768xbf16>
    %cst_18 = arith.constant dense<0.000000e+00> : vector<8x768xf32>
    %27 = tpu.matmul %25, %26, %cst_18 {dimension_numbers = #tpu.dot_dimension_numbers<[1], [0], [0], [1], [0, 0, 1, 1], [], []>} : vector<8x128xbf16>, vector<128x768xbf16>, vector<8x768xf32> -> vector<8x768xf32>
    %28 = tpu.iota {dimensions = array<i32: 0>} : vector<8x1xi32>
    %c8_i32 = arith.constant 8 : i32
    %29 = arith.muli %arg0, %c8_i32 : i32
    %30 = vector.broadcast %29 : i32 to vector<8x1xi32>
    %31 = arith.addi %28, %30 : vector<8x1xi32>
    %c2_i32 = arith.constant 2 : i32
    %32 = vector.broadcast %c2_i32 : i32 to vector<8x1xi32>
    %33 = arith.cmpi slt, %31, %32 : vector<8x1xi32>
    %cst_19 = arith.constant 0.000000e+00 : f32
    %34 = vector.shape_cast %33 : vector<8x1xi1> to vector<8x1xi1>
    %35 = vector.broadcast %34 : vector<8x1xi1> to vector<8x768xi1>
    %36 = vector.broadcast %cst_19 : f32 to vector<8x768xf32>
    %37 = arith.select %35, %27, %36 : vector<8x768xi1>, vector<8x768xf32>
    %38 = arith.mulf %37, %37 : vector<8x768xf32>
    %39 = vector.shape_cast %38 : vector<8x768xf32> to vector<1x8x768xf32>
    %cst_20 = arith.constant dense<0.000000e+00> : vector<1xf32>
    %40 = vector.multi_reduction <add>, %39, %cst_20 [1, 2] : vector<1x8x768xf32> to vector<1xf32>
    %41 = vector.shape_cast %40 : vector<1xf32> to vector<1x1x1xf32>
    %42 = vector.extract %41[0, 0, 0] : f32 from vector<1x1x1xf32>
    %c0_21 = arith.constant 0 : index
    %c0_22 = arith.constant 0 : index
    %43 = memref.load %arg9[%c0_21, %c0_22] : memref<1x1xf32, #tpu.memory_space<smem>>
    memref.store %42, %arg9[%c0_21, %c0_22] : memref<1x1xf32, #tpu.memory_space<smem>>
    return
  }
  func.func @transform_0(%arg0: i32) -> (i32, i32) {
    %c0_i32 = arith.constant 0 : i32
    %c0_i32_0 = arith.constant 0 : i32
    return %arg0, %c0_i32 : i32, i32
  }
  func.func @transform_1(%arg0: i32) -> (i32, i32) {
    %c0_i32 = arith.constant 0 : i32
    %c0_i32_0 = arith.constant 0 : i32
    return %arg0, %c0_i32 : i32, i32
  }
  func.func @transform_2(%arg0: i32) -> (i32, i32) {
    %c0_i32 = arith.constant 0 : i32
    %c0_i32_0 = arith.constant 0 : i32
    %c0_i32_1 = arith.constant 0 : i32
    return %c0_i32, %c0_i32_0 : i32, i32
  }
  func.func @transform_3(%arg0: i32) -> (i32, i32) {
    %c0_i32 = arith.constant 0 : i32
    %c0_i32_0 = arith.constant 0 : i32
    %c0_i32_1 = arith.constant 0 : i32
    return %c0_i32, %c0_i32_0 : i32, i32
  }
  func.func @transform_4(%arg0: i32) -> (i32, i32) {
    %c0_i32 = arith.constant 0 : i32
    %c0_i32_0 = arith.constant 0 : i32
    %c0_i32_1 = arith.constant 0 : i32
    return %c0_i32, %c0_i32_0 : i32, i32
  }
  func.func @transform_5(%arg0: i32) -> (i32, i32) {
    %c0_i32 = arith.constant 0 : i32
    %c0_i32_0 = arith.constant 0 : i32
    %c0_i32_1 = arith.constant 0 : i32
    return %c0_i32, %c0_i32_0 : i32, i32
  }
  func.func @transform_6(%arg0: i32) -> (i32, i32) {
    %c0_i32 = arith.constant 0 : i32
    %c0_i32_0 = arith.constant 0 : i32
    %c0_i32_1 = arith.constant 0 : i32
    return %c0_i32, %c0_i32_0 : i32, i32
  }
  func.func @transform_7(%arg0: i32) -> (i32, i32) {
    %c0_i32 = arith.constant 0 : i32
    %c0_i32_0 = arith.constant 0 : i32
    %c0_i32_1 = arith.constant 0 : i32
    return %c0_i32, %c0_i32_0 : i32, i32
  }
  func.func @transform_8(%arg0: i32) -> (i32, i32) {
    %c0_i32 = arith.constant 0 : i32
    %c0_i32_0 = arith.constant 0 : i32
    return %arg0, %c0_i32 : i32, i32
  }
}

</mosaic_0001>

<llo_original>
// kernel: tpu_custom_call.1
$region0: #{tpu_custom_call.1}
  #allocation0 [shape = 'u32[]', space=smem, size = 0x4, offset = 0x4, fixed_abs, tag = 'smem constant byte address 0x4 - core index']
  #allocation1 [shape = 'u32[144,128]{1,0:T(1,128)}', space=vmem, size = 0x12000, scoped, tag = 'internal scratch']
  %s0 = inlined_call_operand.hbm [shape: f32[8,256], index: 0, kind: input, shape index: {}]
  %s1 = inlined_call_operand.hbm [shape: f32[8,768], index: 1, kind: input, shape index: {}]
  %s2 = inlined_call_operand.hbm [shape: bf16[256,768], index: 2, kind: input, shape index: {}]
  %s3 = inlined_call_operand.vmem [shape: f32[1,768], index: 3, kind: input, shape index: {}]
  %s4 = inlined_call_operand.hbm [shape: bf16[768,128], index: 4, kind: input, shape index: {}]
  %s5 = inlined_call_operand.hbm [shape: bf16[128,768], index: 5, kind: input, shape index: {}]
  %s6 = inlined_call_operand.vmem [shape: f32[1,128], index: 6, kind: input, shape index: {}]
  %s7 = inlined_call_operand.vmem [shape: f32[1,128], index: 7, kind: input, shape index: {}]
  %s8 = inlined_call_operand.hbm [shape: f32[1,1], index: 8, kind: output, shape index: {}]
  %s9 = sld [smem:[#allocation0]]
  $region62: #{tpu_custom_call.1} parent=0
    _
  %s11 = ssub.s32 1, %s9
  %s12 = scalar_select 0, %s11, %s9
  $region1: #{tpu_custom_call.1} parent=0
    #allocation2 [shape = 'u8[8192]{0}', space=vmem, size = 0x2000, scoped, tag = 'input window, operand 0, single buffered']
    #allocation3 [shape = 's32[1]{0}', space=sflag, size = 0x4, scoped, tag = 'scoped memory for tpu_custom_call.1']
    #allocation4 [shape = 's32[1]{0}', space=sflag, size = 0x4, scoped, tag = 'scoped memory for tpu_custom_call.1']
    #allocation5 [shape = 'u8[24576]{0}', space=vmem, size = 0x6000, scoped, tag = 'input window, operand 1, single buffered']
    #allocation6 [shape = 's32[1]{0}', space=sflag, size = 0x4, scoped, tag = 'scoped memory for tpu_custom_call.1']
    #allocation7 [shape = 'u8[393216]{0}', space=vmem, size = 0x60000, scoped, tag = 'input window, operand 2, single buffered']
    #allocation8 [shape = 'u8[196608]{0}', space=vmem, size = 0x30000, scoped, tag = 'input window, operand 4, single buffered']
    #allocation9 [shape = 's32[1]{0}', space=sflag, size = 0x4, scoped, tag = 'scoped memory for tpu_custom_call.1']
    #allocation10 [shape = 'u8[196608]{0}', space=vmem, size = 0x30000, scoped, tag = 'input window, operand 5, single buffered']
    #allocation11 [shape = 'u8[512]{0}', space=smem, size = 0x200, scoped, tag = 'output window, operand 0, single buffered']
    %13 = vsyncpa [#allocation3], 0
    %14 = vsyncpa [#allocation6], 0
    %15 = vsyncpa [#allocation9], 0
    %16 = vsyncpa [#allocation4], 0
    // Predicated region
    $region2: #{tpu_custom_call.1} parent=1 // pred_check
      _
    $region3: #{tpu_custom_call.1} parent=1 // pred_check_branch
      %18 = sbr.rel (0) target = $region5
    $region4: #{tpu_custom_call.1} parent=1 // pred_region
      %s20 = ssub.s32 256, 256
      %21 = vsyncadd [#allocation3], %s20
      %s23 = sshll.u32 [#allocation2], 4
      %s24 = int_to_ptr.vmem [resolvable:$true] %s23
      %26 = dma.hbm_to_vmem [thread:$0]  %s0, 256, %s24, [#allocation3]
    $region5: #{tpu_custom_call.1} parent=1 // pred_fallthru
      _
    // Predicated region
    $region6: #{tpu_custom_call.1} parent=1 // pred_check
      _
    $region7: #{tpu_custom_call.1} parent=1 // pred_check_branch
      %28 = sbr.rel (0) target = $region9
    $region8: #{tpu_custom_call.1} parent=1 // pred_region
      %s30 = ssub.s32 768, 768
      %31 = vsyncadd [#allocation6], %s30
      %s33 = sshll.u32 [#allocation5], 4
      %s34 = int_to_ptr.vmem [resolvable:$true] %s33
      %36 = dma.hbm_to_vmem [thread:$0]  %s1, 768, %s34, [#allocation6]
    $region9: #{tpu_custom_call.1} parent=1 // pred_fallthru
      _
    // Predicated region
    $region10: #{tpu_custom_call.1} parent=1 // pred_check
      _
    $region11: #{tpu_custom_call.1} parent=1 // pred_check_branch
      %38 = sbr.rel (0) target = $region13
    $region12: #{tpu_custom_call.1} parent=1 // pred_region
      %s40 = ssub.s32 12288, 12288
      %41 = vsyncadd [#allocation6], %s40
      %s42 = sshll.u32 [#allocation7], 4
      %s43 = int_to_ptr.vmem [resolvable:$true] %s42
      %48 = dma.hbm_to_vmem [thread:$0]  %s2, 12288, %s43, [#allocation6], 384, 384, 24
    $region13: #{tpu_custom_call.1} parent=1 // pred_fallthru
      _
    // Predicated region
    $region14: #{tpu_custom_call.1} parent=1 // pred_check
      _
    $region15: #{tpu_custom_call.1} parent=1 // pred_check_branch
      %50 = sbr.rel (0) target = $region17
    $region16: #{tpu_custom_call.1} parent=1 // pred_region
      _
    $region17: #{tpu_custom_call.1} parent=1 // pred_fallthru
      _
    // Predicated region
    $region18: #{tpu_custom_call.1} parent=1 // pred_check
      _
    $region19: #{tpu_custom_call.1} parent=1 // pred_check_branch
      %52 = sbr.rel (0) target = $region21
    $region20: #{tpu_custom_call.1} parent=1 // pred_region
      %s54 = ssub.s32 6144, 6144
      %55 = vsyncadd [#allocation9], %s54
      %s56 = sshll.u32 [#allocation8], 4
      %s57 = int_to_ptr.vmem [resolvable:$true] %s56
      %62 = dma.hbm_to_vmem [thread:$0]  %s4, 6144, %s57, [#allocation9], 64, 64, 4
    $region21: #{tpu_custom_call.1} parent=1 // pred_fallthru
      _
    // Predicated region
    $region22: #{tpu_custom_call.1} parent=1 // pred_check
      _
    $region23: #{tpu_custom_call.1} parent=1 // pred_check_branch
      %64 = sbr.rel (0) target = $region25
    $region24: #{tpu_custom_call.1} parent=1 // pred_region
      %s66 = ssub.s32 6144, 6144
      %67 = vsyncadd [#allocation9], %s66
      %s68 = sshll.u32 [#allocation10], 4
      %s69 = int_to_ptr.vmem [resolvable:$true] %s68
      %74 = dma.hbm_to_vmem [thread:$0]  %s5, 6144, %s69, [#allocation9], 384, 384, 24
    $region25: #{tpu_custom_call.1} parent=1 // pred_fallthru
      _
    // Predicated region
    $region26: #{tpu_custom_call.1} parent=1 // pred_check
      _
    $region27: #{tpu_custom_call.1} parent=1 // pred_check_branch
      %76 = sbr.rel (0) target = $region29
    $region28: #{tpu_custom_call.1} parent=1 // pred_region
      _
    $region29: #{tpu_custom_call.1} parent=1 // pred_fallthru
      _
    // Predicated region
    $region30: #{tpu_custom_call.1} parent=1 // pred_check
      _
    $region31: #{tpu_custom_call.1} parent=1 // pred_check_branch
      %78 = sbr.rel (0) target = $region33
    $region32: #{tpu_custom_call.1} parent=1 // pred_region
      _
    $region33: #{tpu_custom_call.1} parent=1 // pred_fallthru
      _
    // Predicated region
    $region34: #{tpu_custom_call.1} parent=1 // pred_check
      _
    $region35: #{tpu_custom_call.1} parent=1 // pred_check_branch
      %80 = sbr.rel (0) target = $region37
    $region36: #{tpu_custom_call.1} parent=1 // pred_region
      %81 = dma.done [#allocation3], 256
    $region37: #{tpu_custom_call.1} parent=1 // pred_fallthru
      _
    // Predicated region
    $region38: #{tpu_custom_call.1} parent=1 // pred_check
      _
    $region39: #{tpu_custom_call.1} parent=1 // pred_check_branch
      %83 = sbr.rel (0) target = $region41
    $region40: #{tpu_custom_call.1} parent=1 // pred_region
      %84 = dma.done [#allocation6], 768
    $region41: #{tpu_custom_call.1} parent=1 // pred_fallthru
      _
    // Predicated region
    $region42: #{tpu_custom_call.1} parent=1 // pred_check
      _
    $region43: #{tpu_custom_call.1} parent=1 // pred_check_branch
      %86 = sbr.rel (0) target = $region45
    $region44: #{tpu_custom_call.1} parent=1 // pred_region
      %87 = dma.done [#allocation6], 12288
    $region45: #{tpu_custom_call.1} parent=1 // pred_fallthru
      _
    // Predicated region
    $region46: #{tpu_custom_call.1} parent=1 // pred_check
      _
    $region47: #{tpu_custom_call.1} parent=1 // pred_check_branch
      %89 = sbr.rel (0) target = $region49
    $region48: #{tpu_custom_call.1} parent=1 // pred_region
      %90 = dma.done [#allocation9], 6144
    $region49: #{tpu_custom_call.1} parent=1 // pred_fallthru
      _
    // Predicated region
    $region50: #{tpu_custom_call.1} parent=1 // pred_check
      _
    $region51: #{tpu_custom_call.1} parent=1 // pred_check_branch
      %92 = sbr.rel (0) target = $region53
    $region52: #{tpu_custom_call.1} parent=1 // pred_region
      %93 = dma.done [#allocation9], 6144
    $region53: #{tpu_custom_call.1} parent=1 // pred_fallthru
      _
    %v95 = vld [vmem:[#allocation2] sm:$0xff]
    %v96 = vld [vmem:[#allocation2 + $0x8] sm:$0xff]
    %v97 = vpack.c.bf16 %v95, %v95
    %v98 = vpack.c.bf16 %v96, %v96
    %v99 = vld [vmem:[#allocation7] sm:$0xff]
    %v100 = vld [vmem:[#allocation7 + $0x8] sm:$0xff]
    %v101 = vld [vmem:[#allocation7 + $0x10] sm:$0xff]
    %v102 = vld [vmem:[#allocation7 + $0x18] sm:$0xff]
    %v103 = vld [vmem:[#allocation7 + $0x20] sm:$0xff]
    %v104 = vld [vmem:[#allocation7 + $0x28] sm:$0xff]
    %v105 = vld [vmem:[#allocation7 + $0x30] sm:$0xff]
    %v106 = vld [vmem:[#allocation7 + $0x38] sm:$0xff]
    %v107 = vld [vmem:[#allocation7 + $0x40] sm:$0xff]
    %v108 = vld [vmem:[#allocation7 + $0x48] sm:$0xff]
    %v109 = vld [vmem:[#allocation7 + $0x50] sm:$0xff]
    %v110 = vld [vmem:[#allocation7 + $0x58] sm:$0xff]
    %v111 = vld [vmem:[#allocation7 + $0x60] sm:$0xff]
    %v112 = vld [vmem:[#allocation7 + $0x68] sm:$0xff]
    %v113 = vld [vmem:[#allocation7 + $0x70] sm:$0xff]
    %v114 = vld [vmem:[#allocation7 + $0x78] sm:$0xff]
    %v115 = vld [vmem:[#allocation7 + $0x80] sm:$0xff]
    %v116 = vld [vmem:[#allocation7 + $0x88] sm:$0xff]
    %v117 = vld [vmem:[#allocation7 + $0x90] sm:$0xff]
    %v118 = vld [vmem:[#allocation7 + $0x98] sm:$0xff]
    %v119 = vld [vmem:[#allocation7 + $0xa0] sm:$0xff]
    %v120 = vld [vmem:[#allocation7 + $0xa8] sm:$0xff]
    %v121 = vld [vmem:[#allocation7 + $0xb0] sm:$0xff]
    %v122 = vld [vmem:[#allocation7 + $0xb8] sm:$0xff]
    %v123 = vld [vmem:[#allocation7 + $0xc0] sm:$0xff]
    %v124 = vld [vmem:[#allocation7 + $0xc8] sm:$0xff]
    %v125 = vld [vmem:[#allocation7 + $0xd0] sm:$0xff]
    %v126 = vld [vmem:[#allocation7 + $0xd8] sm:$0xff]
    %v127 = vld [vmem:[#allocation7 + $0xe0] sm:$0xff]
    %v128 = vld [vmem:[#allocation7 + $0xe8] sm:$0xff]
    %v129 = vld [vmem:[#allocation7 + $0xf0] sm:$0xff]
    %v130 = vld [vmem:[#allocation7 + $0xf8] sm:$0xff]
    %v131 = vld [vmem:[#allocation7 + $0x100] sm:$0xff]
    %v132 = vld [vmem:[#allocation7 + $0x108] sm:$0xff]
    %v133 = vld [vmem:[#allocation7 + $0x110] sm:$0xff]
    %v134 = vld [vmem:[#allocation7 + $0x118] sm:$0xff]
    %v135 = vld [vmem:[#allocation7 + $0x120] sm:$0xff]
    %v136 = vld [vmem:[#allocation7 + $0x128] sm:$0xff]
    %v137 = vld [vmem:[#allocation7 + $0x130] sm:$0xff]
    %v138 = vld [vmem:[#allocation7 + $0x138] sm:$0xff]
    %v139 = vld [vmem:[#allocation7 + $0x140] sm:$0xff]
    %v140 = vld [vmem:[#allocation7 + $0x148] sm:$0xff]
    %v141 = vld [vmem:[#allocation7 + $0x150] sm:$0xff]
    %v142 = vld [vmem:[#allocation7 + $0x158] sm:$0xff]
    %v143 = vld [vmem:[#allocation7 + $0x160] sm:$0xff]
    %v144 = vld [vmem:[#allocation7 + $0x168] sm:$0xff]
    %v145 = vld [vmem:[#allocation7 + $0x170] sm:$0xff]
    %v146 = vld [vmem:[#allocation7 + $0x178] sm:$0xff]
    %v147 = vld [vmem:[#allocation7 + $0x180] sm:$0xff]
    %v148 = vld [vmem:[#allocation7 + $0x188] sm:$0xff]
    %v149 = vld [vmem:[#allocation7 + $0x190] sm:$0xff]
    %v150 = vld [vmem:[#allocation7 + $0x198] sm:$0xff]
    %v151 = vld [vmem:[#allocation7 + $0x1a0] sm:$0xff]
    %v152 = vld [vmem:[#allocation7 + $0x1a8] sm:$0xff]
    %v153 = vld [vmem:[#allocation7 + $0x1b0] sm:$0xff]
    %v154 = vld [vmem:[#allocation7 + $0x1b8] sm:$0xff]
    %v155 = vld [vmem:[#allocation7 + $0x1c0] sm:$0xff]
    %v156 = vld [vmem:[#allocation7 + $0x1c8] sm:$0xff]
    %v157 = vld [vmem:[#allocation7 + $0x1d0] sm:$0xff]
    %v158 = vld [vmem:[#allocation7 + $0x1d8] sm:$0xff]
    %v159 = vld [vmem:[#allocation7 + $0x1e0] sm:$0xff]
    %v160 = vld [vmem:[#allocation7 + $0x1e8] sm:$0xff]
    %v161 = vld [vmem:[#allocation7 + $0x1f0] sm:$0xff]
    %v162 = vld [vmem:[#allocation7 + $0x1f8] sm:$0xff]
    %v163 = vld [vmem:[#allocation7 + $0x200] sm:$0xff]
    %v164 = vld [vmem:[#allocation7 + $0x208] sm:$0xff]
    %v165 = vld [vmem:[#allocation7 + $0x210] sm:$0xff]
    %v166 = vld [vmem:[#allocation7 + $0x218] sm:$0xff]
    %v167 = vld [vmem:[#allocation7 + $0x220] sm:$0xff]
    %v168 = vld [vmem:[#allocation7 + $0x228] sm:$0xff]
    %v169 = vld [vmem:[#allocation7 + $0x230] sm:$0xff]
    %v170 = vld [vmem:[#allocation7 + $0x238] sm:$0xff]
    %v171 = vld [vmem:[#allocation7 + $0x240] sm:$0xff]
    %v172 = vld [vmem:[#allocation7 + $0x248] sm:$0xff]
    %v173 = vld [vmem:[#allocation7 + $0x250] sm:$0xff]
    %v174 = vld [vmem:[#allocation7 + $0x258] sm:$0xff]
    %v175 = vld [vmem:[#allocation7 + $0x260] sm:$0xff]
    %v176 = vld [vmem:[#allocation7 + $0x268] sm:$0xff]
    %v177 = vld [vmem:[#allocation7 + $0x270] sm:$0xff]
    %v178 = vld [vmem:[#allocation7 + $0x278] sm:$0xff]
    %v179 = vld [vmem:[#allocation7 + $0x280] sm:$0xff]
    %v180 = vld [vmem:[#allocation7 + $0x288] sm:$0xff]
    %v181 = vld [vmem:[#allocation7 + $0x290] sm:$0xff]
    %v182 = vld [vmem:[#allocation7 + $0x298] sm:$0xff]
    %v183 = vld [vmem:[#allocation7 + $0x2a0] sm:$0xff]
    %v184 = vld [vmem:[#allocation7 + $0x2a8] sm:$0xff]
    %v185 = vld [vmem:[#allocation7 + $0x2b0] sm:$0xff]
    %v186 = vld [vmem:[#allocation7 + $0x2b8] sm:$0xff]
    %v187 = vld [vmem:[#allocation7 + $0x2c0] sm:$0xff]
    %v188 = vld [vmem:[#allocation7 + $0x2c8] sm:$0xff]
    %v189 = vld [vmem:[#allocation7 + $0x2d0] sm:$0xff]
    %v190 = vld [vmem:[#allocation7 + $0x2d8] sm:$0xff]
    %v191 = vld [vmem:[#allocation7 + $0x2e0] sm:$0xff]
    %v192 = vld [vmem:[#allocation7 + $0x2e8] sm:$0xff]
    %v193 = vld [vmem:[#allocation7 + $0x2f0] sm:$0xff]
    %v194 = vld [vmem:[#allocation7 + $0x2f8] sm:$0xff]
    %v195 = vld [vmem:[%s3] sm:$0x3f]
    %v197 = vlaneseq
    %v198 = vshrl.u32 %v197, 7
    %v199 = vsub.s32 0, %v198
    %v200 = vrot.slane %v195, %v199
    %v201 = vlaneseq
    %v202 = vshrl.u32 %v201, 7
    %v203 = vsub.s32 1, %v202
    %v204 = vrot.slane %v195, %v203
    %v205 = vlaneseq
    %v206 = vshrl.u32 %v205, 7
    %v207 = vsub.s32 2, %v206
    %v208 = vrot.slane %v195, %v207
    %v209 = vlaneseq
    %v210 = vshrl.u32 %v209, 7
    %v211 = vsub.s32 3, %v210
    %v212 = vrot.slane %v195, %v211
    %v213 = vlaneseq
    %v214 = vshrl.u32 %v213, 7
    %v215 = vsub.s32 4, %v214
    %v216 = vrot.slane %v195, %v215
    %v217 = vlaneseq
    %v218 = vshrl.u32 %v217, 7
    %v219 = vsub.s32 5, %v218
    %v220 = vrot.slane %v195, %v219
    %v323 = vunpack.c.l.b16 %v99
    %v324 = vunpack.c.h.b16 %v99
    %v325 = vunpack.c.l.b16 %v100
    %v326 = vunpack.c.h.b16 %v100
    %v327 = vunpack.c.l.b16 %v101
    %v328 = vunpack.c.h.b16 %v101
    %v329 = vunpack.c.l.b16 %v102
    %v330 = vunpack.c.h.b16 %v102
    %v331 = vunpack.c.l.b16 %v103
    %v332 = vunpack.c.h.b16 %v103
    %v333 = vunpack.c.l.b16 %v104
    %v334 = vunpack.c.h.b16 %v104
    %v335 = vunpack.c.l.b16 %v105
    %v336 = vunpack.c.h.b16 %v105
    %v337 = vunpack.c.l.b16 %v106
    %v338 = vunpack.c.h.b16 %v106
    %v339 = vunpack.c.l.b16 %v107
    %v340 = vunpack.c.h.b16 %v107
    %v341 = vunpack.c.l.b16 %v108
    %v342 = vunpack.c.h.b16 %v108
    %v343 = vunpack.c.l.b16 %v109
    %v344 = vunpack.c.h.b16 %v109
    %v345 = vunpack.c.l.b16 %v110
    %v346 = vunpack.c.h.b16 %v110
    %v347 = vunpack.c.l.b16 %v111
    %v348 = vunpack.c.h.b16 %v111
    %v349 = vunpack.c.l.b16 %v112
    %v350 = vunpack.c.h.b16 %v112
    %v351 = vunpack.c.l.b16 %v113
    %v352 = vunpack.c.h.b16 %v113
    %v353 = vunpack.c.l.b16 %v114
    %v354 = vunpack.c.h.b16 %v114
    %v355 = vunpack.c.l.b16 %v115
    %v356 = vunpack.c.h.b16 %v115
    %v357 = vunpack.c.l.b16 %v116
    %v358 = vunpack.c.h.b16 %v116
    %v359 = vunpack.c.l.b16 %v117
    %v360 = vunpack.c.h.b16 %v117
    %v361 = vunpack.c.l.b16 %v118
    %v362 = vunpack.c.h.b16 %v118
    %v363 = vunpack.c.l.b16 %v119
    %v364 = vunpack.c.h.b16 %v119
    %v365 = vunpack.c.l.b16 %v120
    %v366 = vunpack.c.h.b16 %v120
    %v367 = vunpack.c.l.b16 %v121
    %v368 = vunpack.c.h.b16 %v121
    %v369 = vunpack.c.l.b16 %v122
    %v370 = vunpack.c.h.b16 %v122
    %v371 = vunpack.c.l.b16 %v123
    %v372 = vunpack.c.h.b16 %v123
    %v373 = vunpack.c.l.b16 %v124
    %v374 = vunpack.c.h.b16 %v124
    %v375 = vunpack.c.l.b16 %v125
    %v376 = vunpack.c.h.b16 %v125
    %v377 = vunpack.c.l.b16 %v126
    %v378 = vunpack.c.h.b16 %v126
    %v379 = vunpack.c.l.b16 %v127
    %v380 = vunpack.c.h.b16 %v127
    %v381 = vunpack.c.l.b16 %v128
    %v382 = vunpack.c.h.b16 %v128
    %v383 = vunpack.c.l.b16 %v129
    %v384 = vunpack.c.h.b16 %v129
    %v385 = vunpack.c.l.b16 %v130
    %v386 = vunpack.c.h.b16 %v130
    %v387 = vunpack.c.l.b16 %v131
    %v388 = vunpack.c.h.b16 %v131
    %v389 = vunpack.c.l.b16 %v132
    %v390 = vunpack.c.h.b16 %v132
    %v391 = vunpack.c.l.b16 %v133
    %v392 = vunpack.c.h.b16 %v133
    %v393 = vunpack.c.l.b16 %v134
    %v394 = vunpack.c.h.b16 %v134
    %v395 = vunpack.c.l.b16 %v135
    %v396 = vunpack.c.h.b16 %v135
    %v397 = vunpack.c.l.b16 %v136
    %v398 = vunpack.c.h.b16 %v136
    %v399 = vunpack.c.l.b16 %v137
    %v400 = vunpack.c.h.b16 %v137
    %v401 = vunpack.c.l.b16 %v138
    %v402 = vunpack.c.h.b16 %v138
    %v403 = vunpack.c.l.b16 %v139
    %v404 = vunpack.c.h.b16 %v139
    %v405 = vunpack.c.l.b16 %v140
    %v406 = vunpack.c.h.b16 %v140
    %v407 = vunpack.c.l.b16 %v141
    %v408 = vunpack.c.h.b16 %v141
    %v409 = vunpack.c.l.b16 %v142
    %v410 = vunpack.c.h.b16 %v142
    %v411 = vunpack.c.l.b16 %v143
    %v412 = vunpack.c.h.b16 %v143
    %v413 = vunpack.c.l.b16 %v144
    %v414 = vunpack.c.h.b16 %v144
    %v415 = vunpack.c.l.b16 %v145
    %v416 = vunpack.c.h.b16 %v145
    %v417 = vunpack.c.l.b16 %v146
    %v418 = vunpack.c.h.b16 %v146
    %v419 = vunpack.c.l.b16 %v147
    %v420 = vunpack.c.h.b16 %v147
    %v421 = vunpack.c.l.b16 %v148
    %v422 = vunpack.c.h.b16 %v148
    %v423 = vunpack.c.l.b16 %v149
    %v424 = vunpack.c.h.b16 %v149
    %v425 = vunpack.c.l.b16 %v150
    %v426 = vunpack.c.h.b16 %v150
    %v427 = vunpack.c.l.b16 %v151
    %v428 = vunpack.c.h.b16 %v151
    %v429 = vunpack.c.l.b16 %v152
    %v430 = vunpack.c.h.b16 %v152
    %v431 = vunpack.c.l.b16 %v153
    %v432 = vunpack.c.h.b16 %v153
    %v433 = vunpack.c.l.b16 %v154
    %v434 = vunpack.c.h.b16 %v154
    %v435 = vunpack.c.l.b16 %v155
    %v436 = vunpack.c.h.b16 %v155
    %v437 = vunpack.c.l.b16 %v156
    %v438 = vunpack.c.h.b16 %v156
    %v439 = vunpack.c.l.b16 %v157
    %v440 = vunpack.c.h.b16 %v157
    %v441 = vunpack.c.l.b16 %v158
    %v442 = vunpack.c.h.b16 %v158
    %v443 = vunpack.c.l.b16 %v159
    %v444 = vunpack.c.h.b16 %v159
    %v445 = vunpack.c.l.b16 %v160
    %v446 = vunpack.c.h.b16 %v160
    %v447 = vunpack.c.l.b16 %v161
    %v448 = vunpack.c.h.b16 %v161
    %v449 = vunpack.c.l.b16 %v162
    %v450 = vunpack.c.h.b16 %v162
    %v451 = vunpack.c.l.b16 %v163
    %v452 = vunpack.c.h.b16 %v163
    %v453 = vunpack.c.l.b16 %v164
    %v454 = vunpack.c.h.b16 %v164
    %v455 = vunpack.c.l.b16 %v165
    %v456 = vunpack.c.h.b16 %v165
    %v457 = vunpack.c.l.b16 %v166
    %v458 = vunpack.c.h.b16 %v166
    %v459 = vunpack.c.l.b16 %v167
    %v460 = vunpack.c.h.b16 %v167
    %v461 = vunpack.c.l.b16 %v168
    %v462 = vunpack.c.h.b16 %v168
    %v463 = vunpack.c.l.b16 %v169
    %v464 = vunpack.c.h.b16 %v169
    %v465 = vunpack.c.l.b16 %v170
    %v466 = vunpack.c.h.b16 %v170
    %v467 = vunpack.c.l.b16 %v171
    %v468 = vunpack.c.h.b16 %v171
    %v469 = vunpack.c.l.b16 %v172
    %v470 = vunpack.c.h.b16 %v172
    %v471 = vunpack.c.l.b16 %v173
    %v472 = vunpack.c.h.b16 %v173
    %v473 = vunpack.c.l.b16 %v174
    %v474 = vunpack.c.h.b16 %v174
    %v475 = vunpack.c.l.b16 %v175
    %v476 = vunpack.c.h.b16 %v175
    %v477 = vunpack.c.l.b16 %v176
    %v478 = vunpack.c.h.b16 %v176
    %v479 = vunpack.c.l.b16 %v177
    %v480 = vunpack.c.h.b16 %v177
    %v481 = vunpack.c.l.b16 %v178
    %v482 = vunpack.c.h.b16 %v178
    %v483 = vunpack.c.l.b16 %v179
    %v484 = vunpack.c.h.b16 %v179
    %v485 = vunpack.c.l.b16 %v180
    %v486 = vunpack.c.h.b16 %v180
    %v487 = vunpack.c.l.b16 %v181
    %v488 = vunpack.c.h.b16 %v181
    %v489 = vunpack.c.l.b16 %v182
    %v490 = vunpack.c.h.b16 %v182
    %v491 = vunpack.c.l.b16 %v183
    %v492 = vunpack.c.h.b16 %v183
    %v493 = vunpack.c.l.b16 %v184
    %v494 = vunpack.c.h.b16 %v184
    %v495 = vunpack.c.l.b16 %v185
    %v496 = vunpack.c.h.b16 %v185
    %v497 = vunpack.c.l.b16 %v186
    %v498 = vunpack.c.h.b16 %v186
    %v499 = vunpack.c.l.b16 %v187
    %v500 = vunpack.c.h.b16 %v187
    %v501 = vunpack.c.l.b16 %v188
    %v502 = vunpack.c.h.b16 %v188
    %v503 = vunpack.c.l.b16 %v189
    %v504 = vunpack.c.h.b16 %v189
    %v505 = vunpack.c.l.b16 %v190
    %v506 = vunpack.c.h.b16 %v190
    %v507 = vunpack.c.l.b16 %v191
    %v508 = vunpack.c.h.b16 %v191
    %v509 = vunpack.c.l.b16 %v192
    %v510 = vunpack.c.h.b16 %v192
    %v511 = vunpack.c.l.b16 %v193
    %v512 = vunpack.c.h.b16 %v193
    %v513 = vunpack.c.l.b16 %v194
    %v514 = vunpack.c.h.b16 %v194
    %v515 = vpack.c.b16 %v329, %v323
    %v516 = vpack.c.b16 %v330, %v324
    %v517 = vpack.c.b16 %v331, %v325
    %v518 = vpack.c.b16 %v332, %v326
    %v519 = vpack.c.b16 %v333, %v327
    %v520 = vpack.c.b16 %v334, %v328
    %v521 = vpack.c.b16 %v341, %v335
    %v522 = vpack.c.b16 %v342, %v336
    %v523 = vpack.c.b16 %v343, %v337
    %v524 = vpack.c.b16 %v344, %v338
    %v525 = vpack.c.b16 %v345, %v339
    %v526 = vpack.c.b16 %v346, %v340
    %v527 = vpack.c.b16 %v353, %v347
    %v528 = vpack.c.b16 %v354, %v348
    %v529 = vpack.c.b16 %v355, %v349
    %v530 = vpack.c.b16 %v356, %v350
    %v531 = vpack.c.b16 %v357, %v351
    %v532 = vpack.c.b16 %v358, %v352
    %v533 = vpack.c.b16 %v365, %v359
    %v534 = vpack.c.b16 %v366, %v360
    %v535 = vpack.c.b16 %v367, %v361
    %v536 = vpack.c.b16 %v368, %v362
    %v537 = vpack.c.b16 %v369, %v363
    %v538 = vpack.c.b16 %v370, %v364
    %v539 = vpack.c.b16 %v377, %v371
    %v540 = vpack.c.b16 %v378, %v372
    %v541 = vpack.c.b16 %v379, %v373
    %v542 = vpack.c.b16 %v380, %v374
    %v543 = vpack.c.b16 %v381, %v375
    %v544 = vpack.c.b16 %v382, %v376
    %v545 = vpack.c.b16 %v389, %v383
    %v546 = vpack.c.b16 %v390, %v384
    %v547 = vpack.c.b16 %v391, %v385
    %v548 = vpack.c.b16 %v392, %v386
    %v549 = vpack.c.b16 %v393, %v387
    %v550 = vpack.c.b16 %v394, %v388
    %v551 = vpack.c.b16 %v401, %v395
    %v552 = vpack.c.b16 %v402, %v396
    %v553 = vpack.c.b16 %v403, %v397
    %v554 = vpack.c.b16 %v404, %v398
    %v555 = vpack.c.b16 %v405, %v399
    %v556 = vpack.c.b16 %v406, %v400
    %v557 = vpack.c.b16 %v413, %v407
    %v558 = vpack.c.b16 %v414, %v408
    %v559 = vpack.c.b16 %v415, %v409
    %v560 = vpack.c.b16 %v416, %v410
    %v561 = vpack.c.b16 %v417, %v411
    %v562 = vpack.c.b16 %v418, %v412
    %v563 = vpack.c.b16 %v425, %v419
    %v564 = vpack.c.b16 %v426, %v420
    %v565 = vpack.c.b16 %v427, %v421
    %v566 = vpack.c.b16 %v428, %v422
    %v567 = vpack.c.b16 %v429, %v423
    %v568 = vpack.c.b16 %v430, %v424
    %v569 = vpack.c.b16 %v437, %v431
    %v570 = vpack.c.b16 %v438, %v432
    %v571 = vpack.c.b16 %v439, %v433
    %v572 = vpack.c.b16 %v440, %v434
    %v573 = vpack.c.b16 %v441, %v435
    %v574 = vpack.c.b16 %v442, %v436
    %v575 = vpack.c.b16 %v449, %v443
    %v576 = vpack.c.b16 %v450, %v444
    %v577 = vpack.c.b16 %v451, %v445
    %v578 = vpack.c.b16 %v452, %v446
    %v579 = vpack.c.b16 %v453, %v447
    %v580 = vpack.c.b16 %v454, %v448
    %v581 = vpack.c.b16 %v461, %v455
    %v582 = vpack.c.b16 %v462, %v456
    %v583 = vpack.c.b16 %v463, %v457
    %v584 = vpack.c.b16 %v464, %v458
    %v585 = vpack.c.b16 %v465, %v459
    %v586 = vpack.c.b16 %v466, %v460
    %v587 = vpack.c.b16 %v473, %v467
    %v588 = vpack.c.b16 %v474, %v468
    %v589 = vpack.c.b16 %v475, %v469
    %v590 = vpack.c.b16 %v476, %v470
    %v591 = vpack.c.b16 %v477, %v471
    %v592 = vpack.c.b16 %v478, %v472
    %v593 = vpack.c.b16 %v485, %v479
    %v594 = vpack.c.b16 %v486, %v480
    %v595 = vpack.c.b16 %v487, %v481
    %v596 = vpack.c.b16 %v488, %v482
    %v597 = vpack.c.b16 %v489, %v483
    %v598 = vpack.c.b16 %v490, %v484
    %v599 = vpack.c.b16 %v497, %v491
    %v600 = vpack.c.b16 %v498, %v492
    %v601 = vpack.c.b16 %v499, %v493
    %v602 = vpack.c.b16 %v500, %v494
    %v603 = vpack.c.b16 %v501, %v495
    %v604 = vpack.c.b16 %v502, %v496
    %v605 = vpack.c.b16 %v509, %v503
    %v606 = vpack.c.b16 %v510, %v504
    %v607 = vpack.c.b16 %v511, %v505
    %v608 = vpack.c.b16 %v512, %v506
    %v609 = vpack.c.b16 %v513, %v507
    %v610 = vpack.c.b16 %v514, %v508
    %707 = vmatprep.subr.bf16.mxu0 %v516
    %708 = vmatpush1.bf16.msra.mxu0 %v515
    %709 = vmatprep.subr.bf16.mxu0 %v522
    %710 = vmatpush1.bf16.msra.mxu0 %v521
    %711 = vmatprep.subr.bf16.mxu0 %v528
    %712 = vmatpush1.bf16.msra.mxu0 %v527
    %713 = vmatprep.subr.bf16.mxu0 %v534
    %714 = vmatpush1.bf16.msra.mxu0 %v533
    %715 = vmatprep.subr.bf16.mxu0 %v540
    %716 = vmatpush1.bf16.msra.mxu0 %v539
    %717 = vmatprep.subr.bf16.mxu0 %v546
    %718 = vmatpush1.bf16.msra.mxu0 %v545
    %719 = vmatprep.subr.bf16.mxu0 %v552
    %720 = vmatpush1.bf16.msra.mxu0 %v551
    %721 = vmatprep.subr.bf16.mxu0 %v558
    %722 = vmatpush1.bf16.msra.mxu0 %v557
    %723 = vmatprep.subr.bf16.mxu0 %v564
    %724 = vmatpush1.bf16.msra.mxu0 %v563
    %725 = vmatprep.subr.bf16.mxu0 %v570
    %726 = vmatpush1.bf16.msra.mxu0 %v569
    %727 = vmatprep.subr.bf16.mxu0 %v576
    %728 = vmatpush1.bf16.msra.mxu0 %v575
    %729 = vmatprep.subr.bf16.mxu0 %v582
    %730 = vmatpush1.bf16.msra.mxu0 %v581
    %731 = vmatprep.subr.bf16.mxu0 %v588
    %732 = vmatpush1.bf16.msra.mxu0 %v587
    %733 = vmatprep.subr.bf16.mxu0 %v594
    %734 = vmatpush1.bf16.msra.mxu0 %v593
    %735 = vmatprep.subr.bf16.mxu0 %v600
    %736 = vmatpush1.bf16.msra.mxu0 %v599
    %737 = vmatprep.subr.bf16.mxu0 %v606
    %738 = vmatpush1.bf16.msra.mxu0 %v605
    %739 = vmatprep.mubr.bf16.mxu0 %v98
    %740 = vmatmul.mubr.bf16.gmra.mrb[0].mxu0 %v97
    %v741 = vpop.f32.mrb[0].mxu0
    %v742 = vadd.f32 %v200, %v741
    %v743 = vpop.f32.mrb[0].mxu0
    %v744 = vadd.f32 %v204, %v743
    %v745 = vpop.f32.mrb[0].mxu0
    %v746 = vpop.f32.mrb[0].mxu0
    %747 = vdwg.mxu0
    %748 = vmatprep.subr.bf16.mxu0 %v518
    %749 = vmatpush1.bf16.msra.mxu0 %v517
    %750 = vmatprep.subr.bf16.mxu0 %v524
    %751 = vmatpush1.bf16.msra.mxu0 %v523
    %752 = vmatprep.subr.bf16.mxu0 %v530
    %753 = vmatpush1.bf16.msra.mxu0 %v529
    %754 = vmatprep.subr.bf16.mxu0 %v536
    %755 = vmatpush1.bf16.msra.mxu0 %v535
    %756 = vmatprep.subr.bf16.mxu0 %v542
    %757 = vmatpush1.bf16.msra.mxu0 %v541
    %758 = vmatprep.subr.bf16.mxu0 %v548
    %759 = vmatpush1.bf16.msra.mxu0 %v547
    %760 = vmatprep.subr.bf16.mxu0 %v554
    %761 = vmatpush1.bf16.msra.mxu0 %v553
    %762 = vmatprep.subr.bf16.mxu0 %v560
    %763 = vmatpush1.bf16.msra.mxu0 %v559
    %764 = vmatprep.subr.bf16.mxu0 %v566
    %765 = vmatpush1.bf16.msra.mxu0 %v565
    %766 = vmatprep.subr.bf16.mxu0 %v572
    %767 = vmatpush1.bf16.msra.mxu0 %v571
    %768 = vmatprep.subr.bf16.mxu0 %v578
    %769 = vmatpush1.bf16.msra.mxu0 %v577
    %770 = vmatprep.subr.bf16.mxu0 %v584
    %771 = vmatpush1.bf16.msra.mxu0 %v583
    %772 = vmatprep.subr.bf16.mxu0 %v590
    %773 = vmatpush1.bf16.msra.mxu0 %v589
    %774 = vmatprep.subr.bf16.mxu0 %v596
    %775 = vmatpush1.bf16.msra.mxu0 %v595
    %776 = vmatprep.subr.bf16.mxu0 %v602
    %777 = vmatpush1.bf16.msra.mxu0 %v601
    %778 = vmatprep.subr.bf16.mxu0 %v608
    %779 = vmatpush1.bf16.msra.mxu0 %v607
    %780 = vmatprep.mubr.bf16.mxu0 %v98
    %781 = vmatmul.mubr.bf16.gmra.mrb[0].mxu0 %v97
    %v782 = vpop.f32.mrb[0].mxu0
    %v783 = vadd.f32 %v208, %v782
    %v784 = vpop.f32.mrb[0].mxu0
    %v785 = vadd.f32 %v212, %v784
    %v786 = vpop.f32.mrb[0].mxu0
    %v787 = vpop.f32.mrb[0].mxu0
    %788 = vdwg.mxu0
    %789 = vmatprep.subr.bf16.mxu0 %v520
    %790 = vmatpush1.bf16.msra.mxu0 %v519
    %791 = vmatprep.subr.bf16.mxu0 %v526
    %792 = vmatpush1.bf16.msra.mxu0 %v525
    %793 = vmatprep.subr.bf16.mxu0 %v532
    %794 = vmatpush1.bf16.msra.mxu0 %v531
    %795 = vmatprep.subr.bf16.mxu0 %v538
    %796 = vmatpush1.bf16.msra.mxu0 %v537
    %797 = vmatprep.subr.bf16.mxu0 %v544
    %798 = vmatpush1.bf16.msra.mxu0 %v543
    %799 = vmatprep.subr.bf16.mxu0 %v550
    %800 = vmatpush1.bf16.msra.mxu0 %v549
    %801 = vmatprep.subr.bf16.mxu0 %v556
    %802 = vmatpush1.bf16.msra.mxu0 %v555
    %803 = vmatprep.subr.bf16.mxu0 %v562
    %804 = vmatpush1.bf16.msra.mxu0 %v561
    %805 = vmatprep.subr.bf16.mxu0 %v568
    %806 = vmatpush1.bf16.msra.mxu0 %v567
    %807 = vmatprep.subr.bf16.mxu0 %v574
    %808 = vmatpush1.bf16.msra.mxu0 %v573
    %809 = vmatprep.subr.bf16.mxu0 %v580
    %810 = vmatpush1.bf16.msra.mxu0 %v579
    %811 = vmatprep.subr.bf16.mxu0 %v586
    %812 = vmatpush1.bf16.msra.mxu0 %v585
    %813 = vmatprep.subr.bf16.mxu0 %v592
    %814 = vmatpush1.bf16.msra.mxu0 %v591
    %815 = vmatprep.subr.bf16.mxu0 %v598
    %816 = vmatpush1.bf16.msra.mxu0 %v597
    %817 = vmatprep.subr.bf16.mxu0 %v604
    %818 = vmatpush1.bf16.msra.mxu0 %v603
    %819 = vmatprep.subr.bf16.mxu0 %v610
    %820 = vmatpush1.bf16.msra.mxu0 %v609
    %821 = vmatprep.mubr.bf16.mxu0 %v98
    %822 = vmatmul.mubr.bf16.gmra.mrb[0].mxu0 %v97
    %v823 = vpop.f32.mrb[0].mxu0
    %v824 = vadd.f32 %v216, %v823
    %v825 = vpop.f32.mrb[0].mxu0
    %v826 = vadd.f32 %v220, %v825
    %v827 = vpop.f32.mrb[0].mxu0
    %v828 = vpop.f32.mrb[0].mxu0
    %829 = vdwg.mxu0
    %v830 = vtanh.pop %v742
    %v831 = vtanh.pop %v744
    %v832 = vtanh.pop %v783
    %v833 = vtanh.pop %v785
    %v834 = vtanh.pop %v824
    %v835 = vtanh.pop %v826
    %v836 = vld [vmem:[#allocation5] sm:$0xff]
    %v837 = vld [vmem:[#allocation5 + $0x8] sm:$0xff]
    %v838 = vld [vmem:[#allocation5 + $0x10] sm:$0xff]
    %v839 = vld [vmem:[#allocation5 + $0x18] sm:$0xff]
    %v840 = vld [vmem:[#allocation5 + $0x20] sm:$0xff]
    %v841 = vld [vmem:[#allocation5 + $0x28] sm:$0xff]
    %v842 = vadd.f32 %v836, %v830
    %v843 = vadd.f32 %v837, %v831
    %v844 = vadd.f32 %v838, %v832
    %v845 = vadd.f32 %v839, %v833
    %v846 = vadd.f32 %v840, %v834
    %v847 = vadd.f32 %v841, %v835
    %v848 = vmul.f32 %v842, 0.5
    %v849 = vmul.f32 %v843, 0.5
    %v850 = vmul.f32 %v844, 0.5
    %v851 = vmul.f32 %v845, 0.5
    %v852 = vmul.f32 %v846, 0.5
    %v853 = vmul.f32 %v847, 0.5
    %v854 = vpack.c.bf16 %v848, %v848
    %v855 = vpack.c.bf16 %v849, %v849
    %v856 = vpack.c.bf16 %v850, %v850
    %v857 = vpack.c.bf16 %v851, %v851
    %v858 = vpack.c.bf16 %v852, %v852
    %v859 = vpack.c.bf16 %v853, %v853
    %v860 = vld [vmem:[#allocation8] sm:$0xf]
    %v861 = vld [vmem:[#allocation8 + $0x4] sm:$0xf]
    %v862 = vld [vmem:[#allocation8 + $0x8] sm:$0xf]
    %v863 = vld [vmem:[#allocation8 + $0xc] sm:$0xf]
    %v864 = vld [vmem:[#allocation8 + $0x10] sm:$0xf]
    %v865 = vld [vmem:[#allocation8 + $0x14] sm:$0xf]
    %v866 = vld [vmem:[#allocation8 + $0x18] sm:$0xf]
    %v867 = vld [vmem:[#allocation8 + $0x1c] sm:$0xf]
    %v868 = vld [vmem:[#allocation8 + $0x20] sm:$0xf]
    %v869 = vld [vmem:[#allocation8 + $0x24] sm:$0xf]
    %v870 = vld [vmem:[#allocation8 + $0x28] sm:$0xf]
    %v871 = vld [vmem:[#allocation8 + $0x2c] sm:$0xf]
    %v872 = vld [vmem:[#allocation8 + $0x30] sm:$0xf]
    %v873 = vld [vmem:[#allocation8 + $0x34] sm:$0xf]
    %v874 = vld [vmem:[#allocation8 + $0x38] sm:$0xf]
    %v875 = vld [vmem:[#allocation8 + $0x3c] sm:$0xf]
    %v876 = vld [vmem:[#allocation8 + $0x40] sm:$0xf]
    %v877 = vld [vmem:[#allocation8 + $0x44] sm:$0xf]
    %v878 = vld [vmem:[#allocation8 + $0x48] sm:$0xf]
    %v879 = vld [vmem:[#allocation8 + $0x4c] sm:$0xf]
    %v880 = vld [vmem:[#allocation8 + $0x50] sm:$0xf]
    %v881 = vld [vmem:[#allocation8 + $0x54] sm:$0xf]
    %v882 = vld [vmem:[#allocation8 + $0x58] sm:$0xf]
    %v883 = vld [vmem:[#allocation8 + $0x5c] sm:$0xf]
    %v884 = vld [vmem:[#allocation8 + $0x60] sm:$0xf]
    %v885 = vld [vmem:[#allocation8 + $0x64] sm:$0xf]
    %v886 = vld [vmem:[#allocation8 + $0x68] sm:$0xf]
    %v887 = vld [vmem:[#allocation8 + $0x6c] sm:$0xf]
    %v888 = vld [vmem:[#allocation8 + $0x70] sm:$0xf]
    %v889 = vld [vmem:[#allocation8 + $0x74] sm:$0xf]
    %v890 = vld [vmem:[#allocation8 + $0x78] sm:$0xf]
    %v891 = vld [vmem:[#allocation8 + $0x7c] sm:$0xf]
    %v892 = vld [vmem:[#allocation8 + $0x80] sm:$0xf]
    %v893 = vld [vmem:[#allocation8 + $0x84] sm:$0xf]
    %v894 = vld [vmem:[#allocation8 + $0x88] sm:$0xf]
    %v895 = vld [vmem:[#allocation8 + $0x8c] sm:$0xf]
    %v896 = vld [vmem:[#allocation8 + $0x90] sm:$0xf]
    %v897 = vld [vmem:[#allocation8 + $0x94] sm:$0xf]
    %v898 = vld [vmem:[#allocation8 + $0x98] sm:$0xf]
    %v899 = vld [vmem:[#allocation8 + $0x9c] sm:$0xf]
    %v900 = vld [vmem:[#allocation8 + $0xa0] sm:$0xf]
    %v901 = vld [vmem:[#allocation8 + $0xa4] sm:$0xf]
    %v902 = vld [vmem:[#allocation8 + $0xa8] sm:$0xf]
    %v903 = vld [vmem:[#allocation8 + $0xac] sm:$0xf]
    %v904 = vld [vmem:[#allocation8 + $0xb0] sm:$0xf]
    %v905 = vld [vmem:[#allocation8 + $0xb4] sm:$0xf]
    %v906 = vld [vmem:[#allocation8 + $0xb8] sm:$0xf]
    %v907 = vld [vmem:[#allocation8 + $0xbc] sm:$0xf]
    %v908 = vld [vmem:[#allocation8 + $0xc0] sm:$0xf]
    %v909 = vld [vmem:[#allocation8 + $0xc4] sm:$0xf]
    %v910 = vld [vmem:[#allocation8 + $0xc8] sm:$0xf]
    %v911 = vld [vmem:[#allocation8 + $0xcc] sm:$0xf]
    %v912 = vld [vmem:[#allocation8 + $0xd0] sm:$0xf]
    %v913 = vld [vmem:[#allocation8 + $0xd4] sm:$0xf]
    %v914 = vld [vmem:[#allocation8 + $0xd8] sm:$0xf]
    %v915 = vld [vmem:[#allocation8 + $0xdc] sm:$0xf]
    %v916 = vld [vmem:[#allocation8 + $0xe0] sm:$0xf]
    %v917 = vld [vmem:[#allocation8 + $0xe4] sm:$0xf]
    %v918 = vld [vmem:[#allocation8 + $0xe8] sm:$0xf]
    %v919 = vld [vmem:[#allocation8 + $0xec] sm:$0xf]
    %v920 = vld [vmem:[#allocation8 + $0xf0] sm:$0xf]
    %v921 = vld [vmem:[#allocation8 + $0xf4] sm:$0xf]
    %v922 = vld [vmem:[#allocation8 + $0xf8] sm:$0xf]
    %v923 = vld [vmem:[#allocation8 + $0xfc] sm:$0xf]
    %v924 = vld [vmem:[#allocation8 + $0x100] sm:$0xf]
    %v925 = vld [vmem:[#allocation8 + $0x104] sm:$0xf]
    %v926 = vld [vmem:[#allocation8 + $0x108] sm:$0xf]
    %v927 = vld [vmem:[#allocation8 + $0x10c] sm:$0xf]
    %v928 = vld [vmem:[#allocation8 + $0x110] sm:$0xf]
    %v929 = vld [vmem:[#allocation8 + $0x114] sm:$0xf]
    %v930 = vld [vmem:[#allocation8 + $0x118] sm:$0xf]
    %v931 = vld [vmem:[#allocation8 + $0x11c] sm:$0xf]
    %v932 = vld [vmem:[#allocation8 + $0x120] sm:$0xf]
    %v933 = vld [vmem:[#allocation8 + $0x124] sm:$0xf]
    %v934 = vld [vmem:[#allocation8 + $0x128] sm:$0xf]
    %v935 = vld [vmem:[#allocation8 + $0x12c] sm:$0xf]
    %v936 = vld [vmem:[#allocation8 + $0x130] sm:$0xf]
    %v937 = vld [vmem:[#allocation8 + $0x134] sm:$0xf]
    %v938 = vld [vmem:[#allocation8 + $0x138] sm:$0xf]
    %v939 = vld [vmem:[#allocation8 + $0x13c] sm:$0xf]
    %v940 = vld [vmem:[#allocation8 + $0x140] sm:$0xf]
    %v941 = vld [vmem:[#allocation8 + $0x144] sm:$0xf]
    %v942 = vld [vmem:[#allocation8 + $0x148] sm:$0xf]
    %v943 = vld [vmem:[#allocation8 + $0x14c] sm:$0xf]
    %v944 = vld [vmem:[#allocation8 + $0x150] sm:$0xf]
    %v945 = vld [vmem:[#allocation8 + $0x154] sm:$0xf]
    %v946 = vld [vmem:[#allocation8 + $0x158] sm:$0xf]
    %v947 = vld [vmem:[#allocation8 + $0x15c] sm:$0xf]
    %v948 = vld [vmem:[#allocation8 + $0x160] sm:$0xf]
    %v949 = vld [vmem:[#allocation8 + $0x164] sm:$0xf]
    %v950 = vld [vmem:[#allocation8 + $0x168] sm:$0xf]
    %v951 = vld [vmem:[#allocation8 + $0x16c] sm:$0xf]
    %v952 = vld [vmem:[#allocation8 + $0x170] sm:$0xf]
    %v953 = vld [vmem:[#allocation8 + $0x174] sm:$0xf]
    %v954 = vld [vmem:[#allocation8 + $0x178] sm:$0xf]
    %v955 = vld [vmem:[#allocation8 + $0x17c] sm:$0xf]
    %v956 = vld [vmem:[%s6] sm:$0x1]
    %v958 = vlaneseq
    %v959 = vshrl.u32 %v958, 7
    %v960 = vsub.s32 0, %v959
    %v961 = vrot.slane %v956, %v960
    %v1059 = vunpack.c.l.b16 %v860
    %v1060 = vunpack.c.l.b16 %v861
    %v1061 = vunpack.c.l.b16 %v862
    %v1062 = vunpack.c.l.b16 %v863
    %v1063 = vunpack.c.l.b16 %v864
    %v1064 = vunpack.c.l.b16 %v865
    %v1065 = vunpack.c.l.b16 %v866
    %v1066 = vunpack.c.l.b16 %v867
    %v1067 = vunpack.c.l.b16 %v868
    %v1068 = vunpack.c.l.b16 %v869
    %v1069 = vunpack.c.l.b16 %v870
    %v1070 = vunpack.c.l.b16 %v871
    %v1071 = vunpack.c.l.b16 %v872
    %v1072 = vunpack.c.l.b16 %v873
    %v1073 = vunpack.c.l.b16 %v874
    %v1074 = vunpack.c.l.b16 %v875
    %v1075 = vunpack.c.l.b16 %v876
    %v1076 = vunpack.c.l.b16 %v877
    %v1077 = vunpack.c.l.b16 %v878
    %v1078 = vunpack.c.l.b16 %v879
    %v1079 = vunpack.c.l.b16 %v880
    %v1080 = vunpack.c.l.b16 %v881
    %v1081 = vunpack.c.l.b16 %v882
    %v1082 = vunpack.c.l.b16 %v883
    %v1083 = vunpack.c.l.b16 %v884
    %v1084 = vunpack.c.l.b16 %v885
    %v1085 = vunpack.c.l.b16 %v886
    %v1086 = vunpack.c.l.b16 %v887
    %v1087 = vunpack.c.l.b16 %v888
    %v1088 = vunpack.c.l.b16 %v889
    %v1089 = vunpack.c.l.b16 %v890
    %v1090 = vunpack.c.l.b16 %v891
    %v1091 = vunpack.c.l.b16 %v892
    %v1092 = vunpack.c.l.b16 %v893
    %v1093 = vunpack.c.l.b16 %v894
    %v1094 = vunpack.c.l.b16 %v895
    %v1095 = vunpack.c.l.b16 %v896
    %v1096 = vunpack.c.l.b16 %v897
    %v1097 = vunpack.c.l.b16 %v898
    %v1098 = vunpack.c.l.b16 %v899
    %v1099 = vunpack.c.l.b16 %v900
    %v1100 = vunpack.c.l.b16 %v901
    %v1101 = vunpack.c.l.b16 %v902
    %v1102 = vunpack.c.l.b16 %v903
    %v1103 = vunpack.c.l.b16 %v904
    %v1104 = vunpack.c.l.b16 %v905
    %v1105 = vunpack.c.l.b16 %v906
    %v1106 = vunpack.c.l.b16 %v907
    %v1107 = vunpack.c.l.b16 %v908
    %v1108 = vunpack.c.l.b16 %v909
    %v1109 = vunpack.c.l.b16 %v910
    %v1110 = vunpack.c.l.b16 %v911
    %v1111 = vunpack.c.l.b16 %v912
    %v1112 = vunpack.c.l.b16 %v913
    %v1113 = vunpack.c.l.b16 %v914
    %v1114 = vunpack.c.l.b16 %v915
    %v1115 = vunpack.c.l.b16 %v916
    %v1116 = vunpack.c.l.b16 %v917
    %v1117 = vunpack.c.l.b16 %v918
    %v1118 = vunpack.c.l.b16 %v919
    %v1119 = vunpack.c.l.b16 %v920
    %v1120 = vunpack.c.l.b16 %v921
    %v1121 = vunpack.c.l.b16 %v922
    %v1122 = vunpack.c.l.b16 %v923
    %v1123 = vunpack.c.l.b16 %v924
    %v1124 = vunpack.c.l.b16 %v925
    %v1125 = vunpack.c.l.b16 %v926
    %v1126 = vunpack.c.l.b16 %v927
    %v1127 = vunpack.c.l.b16 %v928
    %v1128 = vunpack.c.l.b16 %v929
    %v1129 = vunpack.c.l.b16 %v930
    %v1130 = vunpack.c.l.b16 %v931
    %v1131 = vunpack.c.l.b16 %v932
    %v1132 = vunpack.c.l.b16 %v933
    %v1133 = vunpack.c.l.b16 %v934
    %v1134 = vunpack.c.l.b16 %v935
    %v1135 = vunpack.c.l.b16 %v936
    %v1136 = vunpack.c.l.b16 %v937
    %v1137 = vunpack.c.l.b16 %v938
    %v1138 = vunpack.c.l.b16 %v939
    %v1139 = vunpack.c.l.b16 %v940
    %v1140 = vunpack.c.l.b16 %v941
    %v1141 = vunpack.c.l.b16 %v942
    %v1142 = vunpack.c.l.b16 %v943
    %v1143 = vunpack.c.l.b16 %v944
    %v1144 = vunpack.c.l.b16 %v945
    %v1145 = vunpack.c.l.b16 %v946
    %v1146 = vunpack.c.l.b16 %v947
    %v1147 = vunpack.c.l.b16 %v948
    %v1148 = vunpack.c.l.b16 %v949
    %v1149 = vunpack.c.l.b16 %v950
    %v1150 = vunpack.c.l.b16 %v951
    %v1151 = vunpack.c.l.b16 %v952
    %v1152 = vunpack.c.l.b16 %v953
    %v1153 = vunpack.c.l.b16 %v954
    %v1154 = vunpack.c.l.b16 %v955
    %v1155 = vpack.c.b16 %v1060, %v1059
    %v1156 = vpack.c.b16 %v1062, %v1061
    %v1157 = vpack.c.b16 %v1064, %v1063
    %v1158 = vpack.c.b16 %v1066, %v1065
    %v1159 = vpack.c.b16 %v1068, %v1067
    %v1160 = vpack.c.b16 %v1070, %v1069
    %v1161 = vpack.c.b16 %v1072, %v1071
    %v1162 = vpack.c.b16 %v1074, %v1073
    %v1163 = vpack.c.b16 %v1076, %v1075
    %v1164 = vpack.c.b16 %v1078, %v1077
    %v1165 = vpack.c.b16 %v1080, %v1079
    %v1166 = vpack.c.b16 %v1082, %v1081
    %v1167 = vpack.c.b16 %v1084, %v1083
    %v1168 = vpack.c.b16 %v1086, %v1085
    %v1169 = vpack.c.b16 %v1088, %v1087
    %v1170 = vpack.c.b16 %v1090, %v1089
    %v1171 = vpack.c.b16 %v1092, %v1091
    %v1172 = vpack.c.b16 %v1094, %v1093
    %v1173 = vpack.c.b16 %v1096, %v1095
    %v1174 = vpack.c.b16 %v1098, %v1097
    %v1175 = vpack.c.b16 %v1100, %v1099
    %v1176 = vpack.c.b16 %v1102, %v1101
    %v1177 = vpack.c.b16 %v1104, %v1103
    %v1178 = vpack.c.b16 %v1106, %v1105
    %v1179 = vpack.c.b16 %v1108, %v1107
    %v1180 = vpack.c.b16 %v1110, %v1109
    %v1181 = vpack.c.b16 %v1112, %v1111
    %v1182 = vpack.c.b16 %v1114, %v1113
    %v1183 = vpack.c.b16 %v1116, %v1115
    %v1184 = vpack.c.b16 %v1118, %v1117
    %v1185 = vpack.c.b16 %v1120, %v1119
    %v1186 = vpack.c.b16 %v1122, %v1121
    %v1187 = vpack.c.b16 %v1124, %v1123
    %v1188 = vpack.c.b16 %v1126, %v1125
    %v1189 = vpack.c.b16 %v1128, %v1127
    %v1190 = vpack.c.b16 %v1130, %v1129
    %v1191 = vpack.c.b16 %v1132, %v1131
    %v1192 = vpack.c.b16 %v1134, %v1133
    %v1193 = vpack.c.b16 %v1136, %v1135
    %v1194 = vpack.c.b16 %v1138, %v1137
    %v1195 = vpack.c.b16 %v1140, %v1139
    %v1196 = vpack.c.b16 %v1142, %v1141
    %v1197 = vpack.c.b16 %v1144, %v1143
    %v1198 = vpack.c.b16 %v1146, %v1145
    %v1199 = vpack.c.b16 %v1148, %v1147
    %v1200 = vpack.c.b16 %v1150, %v1149
    %v1201 = vpack.c.b16 %v1152, %v1151
    %v1202 = vpack.c.b16 %v1154, %v1153
    %1251 = vmatprep.subr.bf16.mxu0 0
    %1252 = vmatpush1.bf16.msra.mxu0 %v1155
    %1253 = vmatprep.subr.bf16.mxu0 0
    %1254 = vmatpush1.bf16.msra.mxu0 %v1156
    %1255 = vmatprep.subr.bf16.mxu0 0
    %1256 = vmatpush1.bf16.msra.mxu0 %v1157
    %1257 = vmatprep.subr.bf16.mxu0 0
    %1258 = vmatpush1.bf16.msra.mxu0 %v1158
    %1259 = vmatprep.subr.bf16.mxu0 0
    %1260 = vmatpush1.bf16.msra.mxu0 %v1159
    %1261 = vmatprep.subr.bf16.mxu0 0
    %1262 = vmatpush1.bf16.msra.mxu0 %v1160
    %1263 = vmatprep.subr.bf16.mxu0 0
    %1264 = vmatpush1.bf16.msra.mxu0 %v1161
    %1265 = vmatprep.subr.bf16.mxu0 0
    %1266 = vmatpush1.bf16.msra.mxu0 %v1162
    %1267 = vmatprep.subr.bf16.mxu0 0
    %1268 = vmatpush1.bf16.msra.mxu0 %v1163
    %1269 = vmatprep.subr.bf16.mxu0 0
    %1270 = vmatpush1.bf16.msra.mxu0 %v1164
    %1271 = vmatprep.subr.bf16.mxu0 0
    %1272 = vmatpush1.bf16.msra.mxu0 %v1165
    %1273 = vmatprep.subr.bf16.mxu0 0
    %1274 = vmatpush1.bf16.msra.mxu0 %v1166
    %1275 = vmatprep.subr.bf16.mxu0 0
    %1276 = vmatpush1.bf16.msra.mxu0 %v1167
    %1277 = vmatprep.subr.bf16.mxu0 0
    %1278 = vmatpush1.bf16.msra.mxu0 %v1168
    %1279 = vmatprep.subr.bf16.mxu0 0
    %1280 = vmatpush1.bf16.msra.mxu0 %v1169
    %1281 = vmatprep.subr.bf16.mxu0 0
    %1282 = vmatpush1.bf16.msra.mxu0 %v1170
    %1283 = vmatprep.mubr.bf16.mxu0 %v855
    %1284 = vmatmul.mubr.bf16.gmra.mrb[0].mxu0 %v854
    %v1285 = vpop.f32.mrb[0].mxu0
    %v1286 = vadd.f32 %v961, %v1285
    %v1287 = vpop.f32.mrb[0].mxu0
    %v1288 = vpop.f32.mrb[0].mxu0
    %v1289 = vpop.f32.mrb[0].mxu0
    %1290 = vdwg.mxu0
    %1291 = vmatprep.subr.bf16.mxu0 0
    %1292 = vmatpush1.bf16.msra.mxu0 %v1171
    %1293 = vmatprep.subr.bf16.mxu0 0
    %1294 = vmatpush1.bf16.msra.mxu0 %v1172
    %1295 = vmatprep.subr.bf16.mxu0 0
    %1296 = vmatpush1.bf16.msra.mxu0 %v1173
    %1297 = vmatprep.subr.bf16.mxu0 0
    %1298 = vmatpush1.bf16.msra.mxu0 %v1174
    %1299 = vmatprep.subr.bf16.mxu0 0
    %1300 = vmatpush1.bf16.msra.mxu0 %v1175
    %1301 = vmatprep.subr.bf16.mxu0 0
    %1302 = vmatpush1.bf16.msra.mxu0 %v1176
    %1303 = vmatprep.subr.bf16.mxu0 0
    %1304 = vmatpush1.bf16.msra.mxu0 %v1177
    %1305 = vmatprep.subr.bf16.mxu0 0
    %1306 = vmatpush1.bf16.msra.mxu0 %v1178
    %1307 = vmatprep.subr.bf16.mxu0 0
    %1308 = vmatpush1.bf16.msra.mxu0 %v1179
    %1309 = vmatprep.subr.bf16.mxu0 0
    %1310 = vmatpush1.bf16.msra.mxu0 %v1180
    %1311 = vmatprep.subr.bf16.mxu0 0
    %1312 = vmatpush1.bf16.msra.mxu0 %v1181
    %1313 = vmatprep.subr.bf16.mxu0 0
    %1314 = vmatpush1.bf16.msra.mxu0 %v1182
    %1315 = vmatprep.subr.bf16.mxu0 0
    %1316 = vmatpush1.bf16.msra.mxu0 %v1183
    %1317 = vmatprep.subr.bf16.mxu0 0
    %1318 = vmatpush1.bf16.msra.mxu0 %v1184
    %1319 = vmatprep.subr.bf16.mxu0 0
    %1320 = vmatpush1.bf16.msra.mxu0 %v1185
    %1321 = vmatprep.subr.bf16.mxu0 0
    %1322 = vmatpush1.bf16.msra.mxu0 %v1186
    %1323 = vmatprep.mubr.bf16.mxu0 %v857
    %1324 = vmatmul.mubr.bf16.gmra.mrb[0].mxu0 %v856
    %v1325 = vpop.f32.mrb[0].mxu0
    %v1326 = vadd.f32 %v1286, %v1325
    %v1327 = vpop.f32.mrb[0].mxu0
    %v1328 = vpop.f32.mrb[0].mxu0
    %v1329 = vpop.f32.mrb[0].mxu0
    %1330 = vdwg.mxu0
    %1331 = vmatprep.subr.bf16.mxu0 0
    %1332 = vmatpush1.bf16.msra.mxu0 %v1187
    %1333 = vmatprep.subr.bf16.mxu0 0
    %1334 = vmatpush1.bf16.msra.mxu0 %v1188
    %1335 = vmatprep.subr.bf16.mxu0 0
    %1336 = vmatpush1.bf16.msra.mxu0 %v1189
    %1337 = vmatprep.subr.bf16.mxu0 0
    %1338 = vmatpush1.bf16.msra.mxu0 %v1190
    %1339 = vmatprep.subr.bf16.mxu0 0
    %1340 = vmatpush1.bf16.msra.mxu0 %v1191
    %1341 = vmatprep.subr.bf16.mxu0 0
    %1342 = vmatpush1.bf16.msra.mxu0 %v1192
    %1343 = vmatprep.subr.bf16.mxu0 0
    %1344 = vmatpush1.bf16.msra.mxu0 %v1193
    %1345 = vmatprep.subr.bf16.mxu0 0
    %1346 = vmatpush1.bf16.msra.mxu0 %v1194
    %1347 = vmatprep.subr.bf16.mxu0 0
    %1348 = vmatpush1.bf16.msra.mxu0 %v1195
    %1349 = vmatprep.subr.bf16.mxu0 0
    %1350 = vmatpush1.bf16.msra.mxu0 %v1196
    %1351 = vmatprep.subr.bf16.mxu0 0
    %1352 = vmatpush1.bf16.msra.mxu0 %v1197
    %1353 = vmatprep.subr.bf16.mxu0 0
    %1354 = vmatpush1.bf16.msra.mxu0 %v1198
    %1355 = vmatprep.subr.bf16.mxu0 0
    %1356 = vmatpush1.bf16.msra.mxu0 %v1199
    %1357 = vmatprep.subr.bf16.mxu0 0
    %1358 = vmatpush1.bf16.msra.mxu0 %v1200
    %1359 = vmatprep.subr.bf16.mxu0 0
    %1360 = vmatpush1.bf16.msra.mxu0 %v1201
    %1361 = vmatprep.subr.bf16.mxu0 0
    %1362 = vmatpush1.bf16.msra.mxu0 %v1202
    %1363 = vmatprep.mubr.bf16.mxu0 %v859
    %1364 = vmatmul.mubr.bf16.gmra.mrb[0].mxu0 %v858
    %v1365 = vpop.f32.mrb[0].mxu0
    %v1366 = vadd.f32 %v1326, %v1365
    %v1367 = vpop.f32.mrb[0].mxu0
    %v1368 = vpop.f32.mrb[0].mxu0
    %v1369 = vpop.f32.mrb[0].mxu0
    %1370 = vdwg.mxu0
    %v1371 = vtanh.pop %v1366
    %v1372 = vmul.f32 %v1371, %v1371
    %v1373 = vsub.f32 1.0, %v1372
    %v1374 = vld [vmem:[%s7] sm:$0x1]
    %v1376 = vlaneseq
    %v1377 = vshrl.u32 %v1376, 7
    %v1378 = vsub.s32 0, %v1377
    %v1379 = vrot.slane %v1374, %v1378
    %v1381 = vmul.f32 %v1373, %v1379
    %v1382 = vpack.c.bf16 %v1381, %v1381
    %v1383 = vld [vmem:[#allocation10] sm:$0xff]
    %v1384 = vld [vmem:[#allocation10 + $0x8] sm:$0xff]
    %v1385 = vld [vmem:[#allocation10 + $0x10] sm:$0xff]
    %v1386 = vld [vmem:[#allocation10 + $0x18] sm:$0xff]
    %v1387 = vld [vmem:[#allocation10 + $0x20] sm:$0xff]
    %v1388 = vld [vmem:[#allocation10 + $0x28] sm:$0xff]
    %v1389 = vld [vmem:[#allocation10 + $0x30] sm:$0xff]
    %v1390 = vld [vmem:[#allocation10 + $0x38] sm:$0xff]
    %v1391 = vld [vmem:[#allocation10 + $0x40] sm:$0xff]
    %v1392 = vld [vmem:[#allocation10 + $0x48] sm:$0xff]
    %v1393 = vld [vmem:[#allocation10 + $0x50] sm:$0xff]
    %v1394 = vld [vmem:[#allocation10 + $0x58] sm:$0xff]
    %v1395 = vld [vmem:[#allocation10 + $0x60] sm:$0xff]
    %v1396 = vld [vmem:[#allocation10 + $0x68] sm:$0xff]
    %v1397 = vld [vmem:[#allocation10 + $0x70] sm:$0xff]
    %v1398 = vld [vmem:[#allocation10 + $0x78] sm:$0xff]
    %v1399 = vld [vmem:[#allocation10 + $0x80] sm:$0xff]
    %v1400 = vld [vmem:[#allocation10 + $0x88] sm:$0xff]
    %v1401 = vld [vmem:[#allocation10 + $0x90] sm:$0xff]
    %v1402 = vld [vmem:[#allocation10 + $0x98] sm:$0xff]
    %v1403 = vld [vmem:[#allocation10 + $0xa0] sm:$0xff]
    %v1404 = vld [vmem:[#allocation10 + $0xa8] sm:$0xff]
    %v1405 = vld [vmem:[#allocation10 + $0xb0] sm:$0xff]
    %v1406 = vld [vmem:[#allocation10 + $0xb8] sm:$0xff]
    %v1407 = vld [vmem:[#allocation10 + $0xc0] sm:$0xff]
    %v1408 = vld [vmem:[#allocation10 + $0xc8] sm:$0xff]
    %v1409 = vld [vmem:[#allocation10 + $0xd0] sm:$0xff]
    %v1410 = vld [vmem:[#allocation10 + $0xd8] sm:$0xff]
    %v1411 = vld [vmem:[#allocation10 + $0xe0] sm:$0xff]
    %v1412 = vld [vmem:[#allocation10 + $0xe8] sm:$0xff]
    %v1413 = vld [vmem:[#allocation10 + $0xf0] sm:$0xff]
    %v1414 = vld [vmem:[#allocation10 + $0xf8] sm:$0xff]
    %v1415 = vld [vmem:[#allocation10 + $0x100] sm:$0xff]
    %v1416 = vld [vmem:[#allocation10 + $0x108] sm:$0xff]
    %v1417 = vld [vmem:[#allocation10 + $0x110] sm:$0xff]
    %v1418 = vld [vmem:[#allocation10 + $0x118] sm:$0xff]
    %v1419 = vld [vmem:[#allocation10 + $0x120] sm:$0xff]
    %v1420 = vld [vmem:[#allocation10 + $0x128] sm:$0xff]
    %v1421 = vld [vmem:[#allocation10 + $0x130] sm:$0xff]
    %v1422 = vld [vmem:[#allocation10 + $0x138] sm:$0xff]
    %v1423 = vld [vmem:[#allocation10 + $0x140] sm:$0xff]
    %v1424 = vld [vmem:[#allocation10 + $0x148] sm:$0xff]
    %v1425 = vld [vmem:[#allocation10 + $0x150] sm:$0xff]
    %v1426 = vld [vmem:[#allocation10 + $0x158] sm:$0xff]
    %v1427 = vld [vmem:[#allocation10 + $0x160] sm:$0xff]
    %v1428 = vld [vmem:[#allocation10 + $0x168] sm:$0xff]
    %v1429 = vld [vmem:[#allocation10 + $0x170] sm:$0xff]
    %v1430 = vld [vmem:[#allocation10 + $0x178] sm:$0xff]
    %v1479 = vunpack.c.l.b16 %v1383
    %v1480 = vunpack.c.h.b16 %v1383
    %v1481 = vunpack.c.l.b16 %v1384
    %v1482 = vunpack.c.h.b16 %v1384
    %v1483 = vunpack.c.l.b16 %v1385
    %v1484 = vunpack.c.h.b16 %v1385
    %v1485 = vunpack.c.l.b16 %v1386
    %v1486 = vunpack.c.h.b16 %v1386
    %v1487 = vunpack.c.l.b16 %v1387
    %v1488 = vunpack.c.h.b16 %v1387
    %v1489 = vunpack.c.l.b16 %v1388
    %v1490 = vunpack.c.h.b16 %v1388
    %v1491 = vunpack.c.l.b16 %v1389
    %v1492 = vunpack.c.h.b16 %v1389
    %v1493 = vunpack.c.l.b16 %v1390
    %v1494 = vunpack.c.h.b16 %v1390
    %v1495 = vunpack.c.l.b16 %v1391
    %v1496 = vunpack.c.h.b16 %v1391
    %v1497 = vunpack.c.l.b16 %v1392
    %v1498 = vunpack.c.h.b16 %v1392
    %v1499 = vunpack.c.l.b16 %v1393
    %v1500 = vunpack.c.h.b16 %v1393
    %v1501 = vunpack.c.l.b16 %v1394
    %v1502 = vunpack.c.h.b16 %v1394
    %v1503 = vunpack.c.l.b16 %v1395
    %v1504 = vunpack.c.h.b16 %v1395
    %v1505 = vunpack.c.l.b16 %v1396
    %v1506 = vunpack.c.h.b16 %v1396
    %v1507 = vunpack.c.l.b16 %v1397
    %v1508 = vunpack.c.h.b16 %v1397
    %v1509 = vunpack.c.l.b16 %v1398
    %v1510 = vunpack.c.h.b16 %v1398
    %v1511 = vunpack.c.l.b16 %v1399
    %v1512 = vunpack.c.h.b16 %v1399
    %v1513 = vunpack.c.l.b16 %v1400
    %v1514 = vunpack.c.h.b16 %v1400
    %v1515 = vunpack.c.l.b16 %v1401
    %v1516 = vunpack.c.h.b16 %v1401
    %v1517 = vunpack.c.l.b16 %v1402
    %v1518 = vunpack.c.h.b16 %v1402
    %v1519 = vunpack.c.l.b16 %v1403
    %v1520 = vunpack.c.h.b16 %v1403
    %v1521 = vunpack.c.l.b16 %v1404
    %v1522 = vunpack.c.h.b16 %v1404
    %v1523 = vunpack.c.l.b16 %v1405
    %v1524 = vunpack.c.h.b16 %v1405
    %v1525 = vunpack.c.l.b16 %v1406
    %v1526 = vunpack.c.h.b16 %v1406
    %v1527 = vunpack.c.l.b16 %v1407
    %v1528 = vunpack.c.h.b16 %v1407
    %v1529 = vunpack.c.l.b16 %v1408
    %v1530 = vunpack.c.h.b16 %v1408
    %v1531 = vunpack.c.l.b16 %v1409
    %v1532 = vunpack.c.h.b16 %v1409
    %v1533 = vunpack.c.l.b16 %v1410
    %v1534 = vunpack.c.h.b16 %v1410
    %v1535 = vunpack.c.l.b16 %v1411
    %v1536 = vunpack.c.h.b16 %v1411
    %v1537 = vunpack.c.l.b16 %v1412
    %v1538 = vunpack.c.h.b16 %v1412
    %v1539 = vunpack.c.l.b16 %v1413
    %v1540 = vunpack.c.h.b16 %v1413
    %v1541 = vunpack.c.l.b16 %v1414
    %v1542 = vunpack.c.h.b16 %v1414
    %v1543 = vunpack.c.l.b16 %v1415
    %v1544 = vunpack.c.h.b16 %v1415
    %v1545 = vunpack.c.l.b16 %v1416
    %v1546 = vunpack.c.h.b16 %v1416
    %v1547 = vunpack.c.l.b16 %v1417
    %v1548 = vunpack.c.h.b16 %v1417
    %v1549 = vunpack.c.l.b16 %v1418
    %v1550 = vunpack.c.h.b16 %v1418
    %v1551 = vunpack.c.l.b16 %v1419
    %v1552 = vunpack.c.h.b16 %v1419
    %v1553 = vunpack.c.l.b16 %v1420
    %v1554 = vunpack.c.h.b16 %v1420
    %v1555 = vunpack.c.l.b16 %v1421
    %v1556 = vunpack.c.h.b16 %v1421
    %v1557 = vunpack.c.l.b16 %v1422
    %v1558 = vunpack.c.h.b16 %v1422
    %v1559 = vunpack.c.l.b16 %v1423
    %v1560 = vunpack.c.h.b16 %v1423
    %v1561 = vunpack.c.l.b16 %v1424
    %v1562 = vunpack.c.h.b16 %v1424
    %v1563 = vunpack.c.l.b16 %v1425
    %v1564 = vunpack.c.h.b16 %v1425
    %v1565 = vunpack.c.l.b16 %v1426
    %v1566 = vunpack.c.h.b16 %v1426
    %v1567 = vunpack.c.l.b16 %v1427
    %v1568 = vunpack.c.h.b16 %v1427
    %v1569 = vunpack.c.l.b16 %v1428
    %v1570 = vunpack.c.h.b16 %v1428
    %v1571 = vunpack.c.l.b16 %v1429
    %v1572 = vunpack.c.h.b16 %v1429
    %v1573 = vunpack.c.l.b16 %v1430
    %v1574 = vunpack.c.h.b16 %v1430
    %v1575 = vpack.c.b16 %v1485, %v1479
    %v1576 = vpack.c.b16 %v1486, %v1480
    %v1577 = vpack.c.b16 %v1487, %v1481
    %v1578 = vpack.c.b16 %v1488, %v1482
    %v1579 = vpack.c.b16 %v1489, %v1483
    %v1580 = vpack.c.b16 %v1490, %v1484
    %v1581 = vpack.c.b16 %v1497, %v1491
    %v1582 = vpack.c.b16 %v1498, %v1492
    %v1583 = vpack.c.b16 %v1499, %v1493
    %v1584 = vpack.c.b16 %v1500, %v1494
    %v1585 = vpack.c.b16 %v1501, %v1495
    %v1586 = vpack.c.b16 %v1502, %v1496
    %v1587 = vpack.c.b16 %v1509, %v1503
    %v1588 = vpack.c.b16 %v1510, %v1504
    %v1589 = vpack.c.b16 %v1511, %v1505
    %v1590 = vpack.c.b16 %v1512, %v1506
    %v1591 = vpack.c.b16 %v1513, %v1507
    %v1592 = vpack.c.b16 %v1514, %v1508
    %v1593 = vpack.c.b16 %v1521, %v1515
    %v1594 = vpack.c.b16 %v1522, %v1516
    %v1595 = vpack.c.b16 %v1523, %v1517
    %v1596 = vpack.c.b16 %v1524, %v1518
    %v1597 = vpack.c.b16 %v1525, %v1519
    %v1598 = vpack.c.b16 %v1526, %v1520
    %v1599 = vpack.c.b16 %v1533, %v1527
    %v1600 = vpack.c.b16 %v1534, %v1528
    %v1601 = vpack.c.b16 %v1535, %v1529
    %v1602 = vpack.c.b16 %v1536, %v1530
    %v1603 = vpack.c.b16 %v1537, %v1531
    %v1604 = vpack.c.b16 %v1538, %v1532
    %v1605 = vpack.c.b16 %v1545, %v1539
    %v1606 = vpack.c.b16 %v1546, %v1540
    %v1607 = vpack.c.b16 %v1547, %v1541
    %v1608 = vpack.c.b16 %v1548, %v1542
    %v1609 = vpack.c.b16 %v1549, %v1543
    %v1610 = vpack.c.b16 %v1550, %v1544
    %v1611 = vpack.c.b16 %v1557, %v1551
    %v1612 = vpack.c.b16 %v1558, %v1552
    %v1613 = vpack.c.b16 %v1559, %v1553
    %v1614 = vpack.c.b16 %v1560, %v1554
    %v1615 = vpack.c.b16 %v1561, %v1555
    %v1616 = vpack.c.b16 %v1562, %v1556
    %v1617 = vpack.c.b16 %v1569, %v1563
    %v1618 = vpack.c.b16 %v1570, %v1564
    %v1619 = vpack.c.b16 %v1571, %v1565
    %v1620 = vpack.c.b16 %v1572, %v1566
    %v1621 = vpack.c.b16 %v1573, %v1567
    %v1622 = vpack.c.b16 %v1574, %v1568
    %1671 = vmatprep.subr.bf16.mxu0 %v1576
    %1672 = vmatpush1.bf16.msra.mxu0 %v1575
    %1673 = vmatprep.subr.bf16.mxu0 %v1582
    %1674 = vmatpush1.bf16.msra.mxu0 %v1581
    %1675 = vmatprep.subr.bf16.mxu0 %v1588
    %1676 = vmatpush1.bf16.msra.mxu0 %v1587
    %1677 = vmatprep.subr.bf16.mxu0 %v1594
    %1678 = vmatpush1.bf16.msra.mxu0 %v1593
    %1679 = vmatprep.subr.bf16.mxu0 %v1600
    %1680 = vmatpush1.bf16.msra.mxu0 %v1599
    %1681 = vmatprep.subr.bf16.mxu0 %v1606
    %1682 = vmatpush1.bf16.msra.mxu0 %v1605
    %1683 = vmatprep.subr.bf16.mxu0 %v1612
    %1684 = vmatpush1.bf16.msra.mxu0 %v1611
    %1685 = vmatprep.subr.bf16.mxu0 %v1618
    %1686 = vmatpush1.bf16.msra.mxu0 %v1617
    %1687 = vmatprep.subr.bf16.mxu0 0
    %1688 = vmatpush1.bf16.msra.mxu0 0
    %1689 = vmatprep.subr.bf16.mxu0 0
    %1690 = vmatpush1.bf16.msra.mxu0 0
    %1691 = vmatprep.subr.bf16.mxu0 0
    %1692 = vmatpush1.bf16.msra.mxu0 0
    %1693 = vmatprep.subr.bf16.mxu0 0
    %1694 = vmatpush1.bf16.msra.mxu0 0
    %1695 = vmatprep.subr.bf16.mxu0 0
    %1696 = vmatpush1.bf16.msra.mxu0 0
    %1697 = vmatprep.subr.bf16.mxu0 0
    %1698 = vmatpush1.bf16.msra.mxu0 0
    %1699 = vmatprep.subr.bf16.mxu0 0
    %1700 = vmatpush1.bf16.msra.mxu0 0
    %1701 = vmatprep.subr.bf16.mxu0 0
    %1702 = vmatpush1.bf16.msra.mxu0 0
    %1703 = vmatprep.mubr.bf16.mxu0 0
    %1704 = vmatmul.mubr.bf16.gmra.mrb[0].mxu0 %v1382
    %v1705 = vpop.f32.mrb[0].mxu0
    %v1706 = vadd.f32 0.0, %v1705
    %v1707 = vpop.f32.mrb[0].mxu0
    %v1708 = vadd.f32 0.0, %v1707
    %v1709 = vpop.f32.mrb[0].mxu0
    %v1710 = vpop.f32.mrb[0].mxu0
    %1711 = vdwg.mxu0
    %1712 = vmatprep.subr.bf16.mxu0 %v1578
    %1713 = vmatpush1.bf16.msra.mxu0 %v1577
    %1714 = vmatprep.subr.bf16.mxu0 %v1584
    %1715 = vmatpush1.bf16.msra.mxu0 %v1583
    %1716 = vmatprep.subr.bf16.mxu0 %v1590
    %1717 = vmatpush1.bf16.msra.mxu0 %v1589
    %1718 = vmatprep.subr.bf16.mxu0 %v1596
    %1719 = vmatpush1.bf16.msra.mxu0 %v1595
    %1720 = vmatprep.subr.bf16.mxu0 %v1602
    %1721 = vmatpush1.bf16.msra.mxu0 %v1601
    %1722 = vmatprep.subr.bf16.mxu0 %v1608
    %1723 = vmatpush1.bf16.msra.mxu0 %v1607
    %1724 = vmatprep.subr.bf16.mxu0 %v1614
    %1725 = vmatpush1.bf16.msra.mxu0 %v1613
    %1726 = vmatprep.subr.bf16.mxu0 %v1620
    %1727 = vmatpush1.bf16.msra.mxu0 %v1619
    %1728 = vmatprep.subr.bf16.mxu0 0
    %1729 = vmatpush1.bf16.msra.mxu0 0
    %1730 = vmatprep.subr.bf16.mxu0 0
    %1731 = vmatpush1.bf16.msra.mxu0 0
    %1732 = vmatprep.subr.bf16.mxu0 0
    %1733 = vmatpush1.bf16.msra.mxu0 0
    %1734 = vmatprep.subr.bf16.mxu0 0
    %1735 = vmatpush1.bf16.msra.mxu0 0
    %1736 = vmatprep.subr.bf16.mxu0 0
    %1737 = vmatpush1.bf16.msra.mxu0 0
    %1738 = vmatprep.subr.bf16.mxu0 0
    %1739 = vmatpush1.bf16.msra.mxu0 0
    %1740 = vmatprep.subr.bf16.mxu0 0
    %1741 = vmatpush1.bf16.msra.mxu0 0
    %1742 = vmatprep.subr.bf16.mxu0 0
    %1743 = vmatpush1.bf16.msra.mxu0 0
    %1744 = vmatprep.mubr.bf16.mxu0 0
    %1745 = vmatmul.mubr.bf16.gmra.mrb[0].mxu0 %v1382
    %v1746 = vpop.f32.mrb[0].mxu0
    %v1747 = vadd.f32 0.0, %v1746
    %v1748 = vpop.f32.mrb[0].mxu0
    %v1749 = vadd.f32 0.0, %v1748
    %v1750 = vpop.f32.mrb[0].mxu0
    %v1751 = vpop.f32.mrb[0].mxu0
    %1752 = vdwg.mxu0
    %1753 = vmatprep.subr.bf16.mxu0 %v1580
    %1754 = vmatpush1.bf16.msra.mxu0 %v1579
    %1755 = vmatprep.subr.bf16.mxu0 %v1586
    %1756 = vmatpush1.bf16.msra.mxu0 %v1585
    %1757 = vmatprep.subr.bf16.mxu0 %v1592
    %1758 = vmatpush1.bf16.msra.mxu0 %v1591
    %1759 = vmatprep.subr.bf16.mxu0 %v1598
    %1760 = vmatpush1.bf16.msra.mxu0 %v1597
    %1761 = vmatprep.subr.bf16.mxu0 %v1604
    %1762 = vmatpush1.bf16.msra.mxu0 %v1603
    %1763 = vmatprep.subr.bf16.mxu0 %v1610
    %1764 = vmatpush1.bf16.msra.mxu0 %v1609
    %1765 = vmatprep.subr.bf16.mxu0 %v1616
    %1766 = vmatpush1.bf16.msra.mxu0 %v1615
    %1767 = vmatprep.subr.bf16.mxu0 %v1622
    %1768 = vmatpush1.bf16.msra.mxu0 %v1621
    %1769 = vmatprep.subr.bf16.mxu0 0
    %1770 = vmatpush1.bf16.msra.mxu0 0
    %1771 = vmatprep.subr.bf16.mxu0 0
    %1772 = vmatpush1.bf16.msra.mxu0 0
    %1773 = vmatprep.subr.bf16.mxu0 0
    %1774 = vmatpush1.bf16.msra.mxu0 0
    %1775 = vmatprep.subr.bf16.mxu0 0
    %1776 = vmatpush1.bf16.msra.mxu0 0
    %1777 = vmatprep.subr.bf16.mxu0 0
    %1778 = vmatpush1.bf16.msra.mxu0 0
    %1779 = vmatprep.subr.bf16.mxu0 0
    %1780 = vmatpush1.bf16.msra.mxu0 0
    %1781 = vmatprep.subr.bf16.mxu0 0
    %1782 = vmatpush1.bf16.msra.mxu0 0
    %1783 = vmatprep.subr.bf16.mxu0 0
    %1784 = vmatpush1.bf16.msra.mxu0 0
    %1785 = vmatprep.mubr.bf16.mxu0 0
    %1786 = vmatmul.mubr.bf16.gmra.mrb[0].mxu0 %v1382
    %v1787 = vpop.f32.mrb[0].mxu0
    %v1788 = vadd.f32 0.0, %v1787
    %v1789 = vpop.f32.mrb[0].mxu0
    %v1790 = vadd.f32 0.0, %v1789
    %v1791 = vpop.f32.mrb[0].mxu0
    %v1792 = vpop.f32.mrb[0].mxu0
    %1793 = vdwg.mxu0
    %v1794 = vlaneseq
    %v1795 = vshrl.u32 %v1794, 7
    %s1796 = smul.u32 0, 8
    %v1797 = vstv %s1796
    %v1798 = vadd.s32 %v1795, %v1797
    %vm1799 = vcmp.lt.s32.totalorder %v1798, 2
    %v1800 = vsel %vm1799, 1, 0
    %vm1801 = vcmp.eq.s32.totalorder %v1800, 1
    %v1802 = vsel %vm1801, %v1706, 0.0
    %v1803 = vsel %vm1801, %v1708, 0.0
    %v1804 = vsel %vm1801, %v1747, 0.0
    %v1805 = vsel %vm1801, %v1749, 0.0
    %v1806 = vsel %vm1801, %v1788, 0.0
    %v1807 = vsel %vm1801, %v1790, 0.0
    %v1808 = vmul.f32 %v1802, %v1802
    %v1809 = vmul.f32 %v1803, %v1803
    %v1810 = vmul.f32 %v1804, %v1804
    %v1811 = vmul.f32 %v1805, %v1805
    %v1812 = vmul.f32 %v1806, %v1806
    %v1813 = vmul.f32 %v1807, %v1807
    %v1814 = vadd.f32 %v1808, %v1809
    %v1815 = vadd.f32 %v1814, %v1810
    %v1816 = vadd.f32 %v1815, %v1811
    %v1817 = vadd.f32 %v1816, %v1812
    %v1818 = vadd.f32 %v1817, %v1813
    %1819 = vadd.xlane.f32.xlu0 %v1818
    %v1820 = vpop.xlane.xlu0 %1819
    %v1821 = vrot.slane %v1820, 4
    %v1822 = vadd.f32 %v1820, %v1821
    %v1823 = vrot.slane %v1822, 2
    %v1824 = vadd.f32 %v1822, %v1823
    %v1825 = vrot.slane %v1824, 1
    %v1826 = vadd.f32 %v1824, %v1825
    %s1827 = vtos %v1826
    %s1828 = scalar_lea.smem [#allocation11], 0
    %1829 = sst [smem:[%s1828]] %s1827
    // Predicated region
    $region54: #{tpu_custom_call.1} parent=1 // pred_check
      _
    $region55: #{tpu_custom_call.1} parent=1 // pred_check_branch
      %1831 = sbr.rel (0) target = $region57
    $region56: #{tpu_custom_call.1} parent=1 // pred_region
      %s1833 = ssub.s32 16, 16
      %1834 = vsyncadd [#allocation4], %s1833
      %1837 = dma.smem_to_hbm [#allocation11], 16, %s8, [#allocation4]
    $region57: #{tpu_custom_call.1} parent=1 // pred_fallthru
      _
    // Predicated region
    $region58: #{tpu_custom_call.1} parent=1 // pred_check
      _
    $region59: #{tpu_custom_call.1} parent=1 // pred_check_branch
      %1839 = sbr.rel (0) target = $region61
    $region60: #{tpu_custom_call.1} parent=1 // pred_region
      %1840 = dma.done [#allocation4], 16
    $region61: #{tpu_custom_call.1} parent=1 // pred_fallthru
      _
    %1841 = sfence
    %1842 = vsyncpa [#allocation3], 1
    %1843 = vsyncpa [#allocation6], 1
    %1844 = vsyncpa [#allocation9], 1
    %1845 = vsyncpa [#allocation4], 1

</llo_original>
